<compile_context>
chip_gen: v5e
topology: v5e:2x2
jax: 0.10.0
libtpu: 0.0.40
codegen_flags: <defaults>
</compile_context>

<pallas_src>
import functools

import jax
import jax.numpy as jnp
import numpy as np
from jax import lax
from jax.experimental import pallas as pl
from jax.experimental.pallas import tpu as pltpu


_L_TILE = 512                       # lane tile for long sequences (multiple of 128)
_STORE_DTYPE = jnp.bfloat16         # HBM activation / matmul operand dtype (f32 accum)
_FUSED_VMEM_CAP = 8 * 1024 * 1024   # rough in-kernel buffer budget for the fused path


# ----------------------------------------------------------------------------
# helpers copied from the reference implementation
# ----------------------------------------------------------------------------
def _padding(downsample, kernel_size):
    return max(0, int(np.floor((kernel_size - downsample + 1) / 2)))


def _downsample(n_samples_in, n_samples_out):
    downsample = int(n_samples_in // n_samples_out)
    if downsample < 1:
        raise ValueError("Number of samples should always decrease")
    if n_samples_in % n_samples_out != 0:
        raise ValueError("Samples must decrease by an integer factor.")
    return downsample


def _fold_bn(bn, eps=1e-5):
    scale = bn["gamma"] / jnp.sqrt(bn["var"] + eps)
    shift = bn["beta"] - bn["mean"] * scale
    return scale, shift


@functools.lru_cache(maxsize=None)
def _vmem_limit_bytes():
    # v5e/v6e: 128 MiB physical -> 64 MiB scoped; v7x: 64 MiB physical -> 32 MiB.
    try:
        cap = int(pltpu.get_tpu_info().vmem_capacity_bytes)
        return int(min(max(cap // 2, 16 * 1024 * 1024), 64 * 1024 * 1024))
    except Exception:
        return 32 * 1024 * 1024


def _cparams(n_axes):
    return pltpu.CompilerParams(
        dimension_semantics=("parallel",) * n_axes,
        vmem_limit_bytes=_vmem_limit_bytes(),
    )


def _flatten_w(w, scale=None):
    """(C_out, C_in, K) torch conv weight -> (C_out, K*C_in) bf16, tap-major,
    optionally with the folded-BN per-output-channel scale pre-multiplied."""
    if scale is not None:
        w = w * scale[:, None, None]
    c_out, c_in, k = w.shape
    return jnp.transpose(w, (0, 2, 1)).reshape(c_out, k * c_in).astype(_STORE_DTYPE)


def _col(v, c):
    return v.reshape(c, 1).astype(jnp.float32)


def _phase_view(x, lpad, pad, d, min_len=0):
    """x: (N, C, lpad + L + lpad) activation stored with `lpad` symmetric zero pad.
    Returns (N, d, C, Lq) where out[:, r, :, i] = x_padded_by_pad[:, :, d*i + r];
    each phase is right-padded with zeros to a common Lq >= min_len.
    For d == 1 with lpad == pad this is a zero-copy view (review: no pad copy
    for stride-1 layers)."""
    n, c, lt = x.shape
    l = lt - 2 * lpad
    lq = max(-(-(l + 2 * pad) // d), min_len)
    if d == 1 and lpad == pad and lt >= lq:
        return x[:, None]                                  # free view, no HBM pass
    if lpad >= pad:
        xp = x[:, :, lpad - pad:lpad + l + pad]
    else:
        core = x[:, :, lpad:lpad + l] if lpad else x
        xp = jnp.pad(core, ((0, 0), (0, 0), (pad, pad)))
    if d == 1:
        if xp.shape[2] < lq:
            xp = jnp.pad(xp, ((0, 0), (0, 0), (0, lq - xp.shape[2])))
        return xp[:, None]
    phases = []
    for r in range(d):
        ph = xp[:, :, r::d]
        if ph.shape[2] < lq:
            ph = jnp.pad(ph, ((0, 0), (0, 0), (0, lq - ph.shape[2])))
        phases.append(ph)
    return jnp.stack(phases, axis=1)


def _use_fused_block(c_in, c_out, d, k, l_out):
    if l_out > _L_TILE:
        return False
    est = (d * k * c_in + k * c_out + 4 * d * c_out) * l_out * 4
    return est <= _FUSED_VMEM_CAP


# ----------------------------------------------------------------------------
# Pallas kernels
# ----------------------------------------------------------------------------
def _conv_bn_act_kernel(x_ref, w_ref, shift_ref, o_ref, *,
                        k_taps, d, l_tile, n_lt, relu, out_pad):
    """[relu](conv1d(x) + shift); BN scale pre-folded into w.

    x_ref:     (d, C_in, Lq)    leading-dim polyphase input (full L per sample)
    w_ref:     (C_out, K*C_in)  folded weight, tap-major columns (bf16)
    shift_ref: (C_out, 1)       f32
    o_ref:     (C_out, l_tile [+ 2*out_pad])   lane-dense bf16 tile
    """
    if n_lt == 1:
        l0 = 0
    else:
        l0 = pl.multiple_of(pl.program_id(1) * l_tile, l_tile)
    # one MXU matmul: contraction dim = K*C_in (tap stacking)
    taps = [x_ref[k % d, :, pl.ds(l0 + k // d, l_tile)] for k in range(k_taps)]
    stacked = jnp.concatenate(taps, axis=0)
    y = jnp.dot(w_ref[...], stacked, preferred_element_type=jnp.float32)
    y = y + shift_ref[...]
    if relu:
        y = jnp.maximum(y, 0.0)
    y = y.astype(o_ref.dtype)
    if out_pad:
        c_out = w_ref.shape[0]
        z = jnp.zeros((c_out, out_pad), o_ref.dtype)
        y = jnp.concatenate([z, y, z], axis=1)      # pre-pad for the next conv
    o_ref[...] = y


def _res_block_kernel(*refs, k_taps, d, l_out, pad2, y_off, has_skip_w, out_pad):
    """Fully fused residual block (single L tile):
        h      = relu(bn1(conv1(x)))                 (h never leaves VMEM)
        s      = conv2(h, stride=d) + skip(y)        skip = [maxpool(d)] [1x1]
        y_new  = s ;  act = relu(bn2(s))
    x_ref: (d, C_in, Lx)  polyphase view of x padded by pad1 (conv1 padding).
    y_ref: (d or 1, C_skip, Ly)  pool phases of y (raw padded y when d == 1).
    """
    if has_skip_w:
        (x_ref, y_ref, w1_ref, sh1_ref, w2_ref, ws_ref, sc2_ref, sh2_ref,
         ysum_ref, act_ref) = refs
    else:
        (x_ref, y_ref, w1_ref, sh1_ref, w2_ref, sc2_ref, sh2_ref,
         ysum_ref, act_ref) = refs
        ws_ref = None

    kk = k_taps
    c_out = w1_ref.shape[0]
    halo_l = -((-pad2) // d)             # ceil(pad2 / d)
    halo_r = -((-(kk - 1 - pad2)) // d)  # ceil((K-1-pad2) / d)

    # ---- conv1 + bn1 + relu, one tap-stacked matmul per downsample phase ----
    h_buf = []
    for r in range(d):
        taps = []
        for k in range(kk):
            r2, q = (r + k) % d, (r + k) // d
            taps.append(x_ref[r2, :, q:q + l_out])
        h = jnp.dot(w1_ref[...], jnp.concatenate(taps, axis=0),
                    preferred_element_type=jnp.float32)
        h = jnp.maximum(h + sh1_ref[...], 0.0).astype(_STORE_DTYPE)
        # TODO(synk): training-mode dropout mask would be applied to h here.
        parts = []
        if halo_l:
            parts.append(jnp.zeros((c_out, halo_l), _STORE_DTYPE))
        parts.append(h)
        if halo_r:
            parts.append(jnp.zeros((c_out, halo_r), _STORE_DTYPE))
        h_buf.append(jnp.concatenate(parts, axis=1) if len(parts) > 1 else h)

    # ---- conv2 (stride d) directly on the in-VMEM h phases, tap-stacked ----
    taps2 = []
    for k in range(kk):
        e = k - pad2
        q2 = e // d                       # floor division (may be negative)
        r2 = e - d * q2
        s0 = halo_l + q2                  # >= 0 by construction
        taps2.append(h_buf[r2][:, s0:s0 + l_out])
    s = jnp.dot(w2_ref[...], jnp.concatenate(taps2, axis=0),
                preferred_element_type=jnp.float32)

    # ---- skip path: maxpool over phases, then optional 1x1 conv ----
    pooled = y_ref[0, :, y_off:y_off + l_out]
    for r in range(1, d):
        pooled = jnp.maximum(pooled, y_ref[r, :, y_off:y_off + l_out])
    if has_skip_w:
        skip = jnp.dot(ws_ref[...], pooled, preferred_element_type=jnp.float32)
    else:
        skip = pooled.astype(jnp.float32)

    s = s + skip
    ysum_ref[...] = s.astype(ysum_ref.dtype)
    act = jnp.maximum(s * sc2_ref[...] + sh2_ref[...], 0.0).astype(act_ref.dtype)
    if out_pad:
        z = jnp.zeros((c_out, out_pad), act_ref.dtype)
        act = jnp.concatenate([z, act, z], axis=1)
    act_ref[...] = act


def _block_tail_kernel(*refs, k_taps, d, l_tile, n_lt, has_skip_w):
    """Fallback (L-tiled) residual-block tail:
        s = conv2(h) + skip(y) ; y_new = s ; act = relu(bn2(s))."""
    if has_skip_w:
        x_ref, y_ref, w_ref, ws_ref, sc_ref, sh_ref, sum_ref, act_ref = refs
    else:
        x_ref, y_ref, w_ref, sc_ref, sh_ref, sum_ref, act_ref = refs
        ws_ref = None
    if n_lt == 1:
        l0 = 0
    else:
        l0 = pl.multiple_of(pl.program_id(1) * l_tile, l_tile)
    taps = [x_ref[k % d, :, pl.ds(l0 + k // d, l_tile)] for k in range(k_taps)]
    s = jnp.dot(w_ref[...], jnp.concatenate(taps, axis=0),
                preferred_element_type=jnp.float32)
    pooled = y_ref[0]
    for r in range(1, d):
        pooled = jnp.maximum(pooled, y_ref[r])
    if has_skip_w:
        skip = jnp.dot(ws_ref[...], pooled, preferred_element_type=jnp.float32)
    else:
        skip = pooled.astype(jnp.float32)
    s = s + skip
    sum_ref[...] = s.astype(sum_ref.dtype)
    act_ref[...] = jnp.maximum(s * sc_ref[...] + sh_ref[...], 0.0).astype(act_ref.dtype)


def _linear_kernel(x_ref, w_ref, b_ref, o_ref):
    o_ref[...] = (
        jnp.dot(x_ref[...], w_ref[...], preferred_element_type=jnp.float32)
        + b_ref[...]
    )


# ----------------------------------------------------------------------------
# Pallas wrappers
# ----------------------------------------------------------------------------
def conv_bn_act(x, lpad, w, stride, pad, scale, shift, relu, out_pad):
    """[relu](BN(conv1d(x))) as one Pallas kernel.  x is the stored activation
    (N, C_in, lpad+L+lpad); returns (activation, new_lpad)."""
    n, c_in, _ = x.shape
    l_in = x.shape[2] - 2 * lpad
    c_out, _, k = w.shape
    l_out = (l_in + 2 * pad - k) // stride + 1
    if l_out <= _L_TILE:
        l_tile, n_lt, l_out_p = l_out, 1, l_out
    else:
        l_tile = _L_TILE
        n_lt = -(-l_out // _L_TILE)
        l_out_p = n_lt * l_tile
        out_pad = 0            # TODO(synk): pre-padded outputs for the tiled path
    qmax = (k - 1) // stride
    xp = _phase_view(x, lpad, pad, stride, min_len=l_out_p + qmax)
    lq = xp.shape[3]
    w_f = _flatten_w(w, scale)
    out_w = l_out_p + 2 * out_pad

    if n_lt == 1:
        out_specs = pl.BlockSpec((None, c_out, out_w), lambda i, j: (i, 0, 0))
    else:
        out_specs = pl.BlockSpec((None, c_out, l_tile), lambda i, j: (i, 0, j))

    cost = pl.CostEstimate(
        flops=2 * n * k * c_in * c_out * l_out, transcendentals=0,
        bytes_accessed=int(xp.size * 2 + w_f.size * 2 + n * c_out * out_w * 2))

    out = pl.pallas_call(
        functools.partial(_conv_bn_act_kernel, k_taps=k, d=stride, l_tile=l_tile,
                          n_lt=n_lt, relu=relu, out_pad=out_pad),
        grid=(n, n_lt),
        in_specs=[
            pl.BlockSpec((None, stride, c_in, lq), lambda i, j: (i, 0, 0, 0)),
            pl.BlockSpec((c_out, k * c_in), lambda i, j: (0, 0)),
            pl.BlockSpec((c_out, 1), lambda i, j: (0, 0)),
        ],
        out_specs=out_specs,
        out_shape=jax.ShapeDtypeStruct((n, c_out, out_w), _STORE_DTYPE),
        compiler_params=_cparams(2),
        cost_estimate=cost,
    )(xp, w_f, _col(shift, c_out))
    if l_out_p != l_out:
        out = out[:, :, :l_out]
        out_pad = 0
    return out, out_pad


def res_block(x, x_lpad, y, y_lpad, blk, k, out_pad):
    """One fully fused residual block (single L tile).  Returns (act, lpad, y_new)."""
    n, c_in, _ = x.shape
    l_in = x.shape[2] - 2 * x_lpad
    c_out = blk["conv1_w"].shape[0]
    d = blk["downsample"]
    pad1, pad2 = blk["pad1"], blk["pad2"]
    l_out = l_in // d
    c_skip = y.shape[1]

    xp = _phase_view(x, x_lpad, pad1, d)
    lxp = xp.shape[3]
    if d == 1:
        y_ph, y_off = y[:, None], y_lpad          # zero-copy view
    else:
        y_ph, y_off = _phase_view(y, y_lpad, 0, d), 0
    ly = y_ph.shape[3]
    n_ph = y_ph.shape[1]

    sc1, sh1 = _fold_bn(blk["bn1"])
    sc2, sh2 = _fold_bn(blk["bn2"])
    w1_f = _flatten_w(blk["conv1_w"], sc1)
    w2_f = _flatten_w(blk["conv2_w"], None)       # bn2 is applied after the add
    has_w = blk["skip_w"] is not None

    inputs = [xp, y_ph, w1_f, _col(sh1, c_out), w2_f]
    in_specs = [
        pl.BlockSpec((None, d, c_in, lxp), lambda i: (i, 0, 0, 0)),
        pl.BlockSpec((None, n_ph, c_skip, ly), lambda i: (i, 0, 0, 0)),
        pl.BlockSpec((c_out, k * c_in), lambda i: (0, 0)),
        pl.BlockSpec((c_out, 1), lambda i: (0, 0)),
        pl.BlockSpec((c_out, k * c_out), lambda i: (0, 0)),
    ]
    if has_w:
        inputs.append(blk["skip_w"][:, :, 0].astype(_STORE_DTYPE))
        in_specs.append(pl.BlockSpec((c_out, c_skip), lambda i: (0, 0)))
    inputs += [_col(sc2, c_out), _col(sh2, c_out)]
    in_specs += [pl.BlockSpec((c_out, 1), lambda i: (0, 0))] * 2

    out_w = l_out + 2 * out_pad
    flops = 2 * n * l_out * (d * k * c_in * c_out + k * c_out * c_out
                             + (c_skip * c_out if has_w else 0))
    cost = pl.CostEstimate(
        flops=flops, transcendentals=0,
        bytes_accessed=int((xp.size + y_ph.size + w1_f.size + w2_f.size) * 2
                           + n * c_out * (l_out + out_w) * 2))

    ysum, act = pl.pallas_call(
        functools.partial(_res_block_kernel, k_taps=k, d=d, l_out=l_out, pad2=pad2,
                          y_off=y_off, has_skip_w=has_w, out_pad=out_pad),
        grid=(n,),
        in_specs=in_specs,
        out_specs=(pl.BlockSpec((None, c_out, l_out), lambda i: (i, 0, 0)),
                   pl.BlockSpec((None, c_out, out_w), lambda i: (i, 0, 0))),
        out_shape=(jax.ShapeDtypeStruct((n, c_out, l_out), _STORE_DTYPE),
                   jax.ShapeDtypeStruct((n, c_out, out_w), _STORE_DTYPE)),
        compiler_params=_cparams(1),
        cost_estimate=cost,
    )(*inputs)
    return act, out_pad, ysum


def block_tail(h, h_lpad, y, y_lpad, blk, k):
    """Fallback fused tail (conv2 + skip + add + bn2 + relu), L-tiled.
    Returns (act, 0, y_new)."""
    n, c_h, _ = h.shape
    l_in = h.shape[2] - 2 * h_lpad
    c_out = blk["conv2_w"].shape[0]
    d = blk["downsample"]
    pad2 = blk["pad2"]
    l_out = (l_in + 2 * pad2 - k) // d + 1
    if l_out <= _L_TILE:
        l_tile, n_lt, l_out_p = l_out, 1, l_out
    else:
        l_tile = _L_TILE
        n_lt = -(-l_out // _L_TILE)
        l_out_p = n_lt * l_tile
    qmax = (k - 1) // d
    xp = _phase_view(h, h_lpad, pad2, d, min_len=l_out_p + qmax)
    lq = xp.shape[3]
    c_skip = y.shape[1]
    yp = _phase_view(y, y_lpad, 0, d, min_len=l_out_p)

    sc2, sh2 = _fold_bn(blk["bn2"])
    w2_f = _flatten_w(blk["conv2_w"], None)
    has_w = blk["skip_w"] is not None

    inputs = [xp, yp, w2_f]
    in_specs = [
        pl.BlockSpec((None, d, c_h, lq), lambda i, j: (i, 0, 0, 0)),
        pl.BlockSpec((None, d, c_skip, l_tile), lambda i, j: (i, 0, 0, j)),
        pl.BlockSpec((c_out, k * c_h), lambda i, j: (0, 0)),
    ]
    if has_w:
        inputs.append(blk["skip_w"][:, :, 0].astype(_STORE_DTYPE))
        in_specs.append(pl.BlockSpec((c_out, c_skip), lambda i, j: (0, 0)))
    inputs += [_col(sc2, c_out), _col(sh2, c_out)]
    in_specs += [pl.BlockSpec((c_out, 1), lambda i, j: (0, 0))] * 2

    out_spec = pl.BlockSpec((None, c_out, l_tile), lambda i, j: (i, 0, j))
    out_shape = jax.ShapeDtypeStruct((n, c_out, l_out_p), _STORE_DTYPE)
    flops = 2 * n * l_out * (k * c_h * c_out + (c_skip * c_out if has_w else 0))
    cost = pl.CostEstimate(
        flops=flops, transcendentals=0,
        bytes_accessed=int((xp.size + yp.size + w2_f.size) * 2
                           + 2 * n * c_out * l_out_p * 2))

    ysum, act = pl.pallas_call(
        functools.partial(_block_tail_kernel, k_taps=k, d=d, l_tile=l_tile,
                          n_lt=n_lt, has_skip_w=has_w),
        grid=(n, n_lt),
        in_specs=in_specs,
        out_specs=(out_spec, out_spec),
        out_shape=(out_shape, out_shape),
        compiler_params=_cparams(2),
        cost_estimate=cost,
    )(*inputs)
    if l_out_p != l_out:
        ysum = ysum[:, :, :l_out]
        act = act[:, :, :l_out]
    return act, 0, ysum


def linear(x_flat, w_t, b_p):
    """x_flat @ w_t + b; weight pre-transposed & class-padded to 128 lanes,
    batch padded to a multiple of 8 sublanes."""
    n, feat = x_flat.shape
    n_p = -(-n // 8) * 8
    if n_p != n:
        x_flat = jnp.pad(x_flat, ((0, n_p - n), (0, 0)))
    n_cls_p = w_t.shape[1]
    vmem = pl.BlockSpec(memory_space=pltpu.MemorySpace.VMEM)
    out = pl.pallas_call(
        _linear_kernel,
        out_shape=jax.ShapeDtypeStruct((n_p, n_cls_p), jnp.float32),
        in_specs=[vmem, vmem, vmem],
        out_specs=vmem,
        compiler_params=pltpu.CompilerParams(vmem_limit_bytes=_vmem_limit_bytes()),
        cost_estimate=pl.CostEstimate(
            flops=2 * n_p * feat * n_cls_p, transcendentals=0,
            bytes_accessed=int((n_p * feat + feat * n_cls_p + n_p * n_cls_p) * 4)),
    )(x_flat, w_t, b_p.reshape(1, n_cls_p))
    return out[:n]


# ----------------------------------------------------------------------------
# parameters (deterministic synthetic init) + forward
# ----------------------------------------------------------------------------
def _bn_params(key, c):
    k1, k2, k3, k4 = jax.random.split(key, 4)
    return dict(
        gamma=1.0 + 0.1 * jax.random.normal(k1, (c,), jnp.float32),
        beta=0.1 * jax.random.normal(k2, (c,), jnp.float32),
        mean=0.1 * jax.random.normal(k3, (c,), jnp.float32),
        var=jax.random.uniform(k4, (c,), jnp.float32, 0.5, 1.5),
    )


def init_params(key, input_dim, blocks_dim, n_classes, kernel_size):
    keys = iter(jax.random.split(key, 64))
    nf_in, nf_out = input_dim[0], blocks_dim[0][0]
    ns_in, ns_out = input_dim[1], blocks_dim[0][1]
    ds = _downsample(ns_in, ns_out)
    params = {
        "kernel_size": kernel_size,
        "conv1_w": 0.1 * jax.random.normal(next(keys), (nf_out, nf_in, kernel_size), jnp.float32),
        "conv1_stride": ds,
        "conv1_pad": _padding(ds, kernel_size),
        "bn1": _bn_params(next(keys), nf_out),
        "blocks": [],
    }
    for n_filters, n_samples in blocks_dim:
        b_in, b_out = nf_out, n_filters
        s_in, s_out = ns_out, n_samples
        bds = _downsample(s_in, s_out)
        blk = {
            "conv1_w": 0.1 * jax.random.normal(next(keys), (b_out, b_in, kernel_size), jnp.float32),
            "pad1": _padding(1, kernel_size),
            "bn1": _bn_params(next(keys), b_out),
            "conv2_w": 0.1 * jax.random.normal(next(keys), (b_out, b_out, kernel_size), jnp.float32),
            "pad2": _padding(bds, kernel_size),
            "bn2": _bn_params(next(keys), b_out),
            "downsample": bds,
            "skip_w": (0.1 * jax.random.normal(next(keys), (b_out, b_in, 1), jnp.float32)
                       if b_in != b_out else None),
        }
        params["blocks"].append(blk)
        nf_out, ns_out = b_out, s_out
    nf_last, ns_last = blocks_dim[-1]
    feat = nf_last * ns_last
    lin_w = 0.1 * jax.random.normal(next(keys), (n_classes, feat), jnp.float32)
    lin_b = 0.1 * jax.random.normal(next(keys), (n_classes,), jnp.float32)
    n_cls_p = -(-n_classes // 128) * 128
    params["lin_w_t"] = jnp.zeros((feat, n_cls_p), jnp.float32).at[:, :n_classes].set(lin_w.T)
    params["lin_b_p"] = jnp.zeros((n_cls_p,), jnp.float32).at[:n_classes].set(lin_b)
    params["n_classes"] = n_classes
    return params


def resnet1d_forward(params, x):
    k = params["kernel_size"]
    padw = (k - 1) // 2
    x = x.astype(_STORE_DTYPE)

    # stem: conv1 -> bn1 (no relu); output pre-padded for the first block's conv1
    sc, sh = _fold_bn(params["bn1"])
    act, lpad = conv_bn_act(x, 0, params["conv1_w"], params["conv1_stride"],
                            params["conv1_pad"], sc, sh, relu=False, out_pad=padw)
    y, y_lpad = act, lpad                 # reference: y = x after the stem BN

    n_blk = len(params["blocks"])
    for bi, blk in enumerate(params["blocks"]):
        last = bi == n_blk - 1
        out_pad = 0 if last else padw
        c_in, c_out = blk["conv1_w"].shape[1], blk["conv1_w"].shape[0]
        d = blk["downsample"]
        l_in = act.shape[2] - 2 * lpad
        l_out = l_in // d
        if _use_fused_block(c_in, c_out, d, k, l_out):
            act, lpad, y_new = res_block(act, lpad, y, y_lpad, blk, k, out_pad)
        else:
            # long-sequence fallback: L-tiled head conv + fused tail kernel
            sc1, sh1 = _fold_bn(blk["bn1"])
            h, h_lpad = conv_bn_act(act, lpad, blk["conv1_w"], 1, blk["pad1"],
                                    sc1, sh1, relu=True, out_pad=0)
            act, lpad, y_new = block_tail(h, h_lpad, y, y_lpad, blk, k)
        y, y_lpad = y_new, 0

    n = act.shape[0]
    if lpad:
        act = act[:, :, lpad:act.shape[2] - lpad]
    feats = act.reshape(n, -1).astype(jnp.float32)   # matches torch x.view(N, -1)
    logits = linear(feats, params["lin_w_t"], params["lin_b_p"])
    return logits[:, :params["n_classes"]]


# ----------------------------------------------------------------------------
# pure-JAX f32 reference (for a tolerance check against the bf16 kernels)
# ----------------------------------------------------------------------------
def _reference_forward(params, x):
    def conv(v, w, stride, pad):
        return lax.conv_general_dilated(v, w, window_strides=(stride,),
                                        padding=[(pad, pad)],
                                        dimension_numbers=("NCH", "OIH", "NCH"))

    def bn(v, p, eps=1e-5):
        sc = p["gamma"] / jnp.sqrt(p["var"] + eps)
        sh = p["beta"] - p["mean"] * sc
        return v * sc[None, :, None] + sh[None, :, None]

    x = bn(conv(x, params["conv1_w"], params["conv1_stride"], params["conv1_pad"]),
           params["bn1"])
    y = x
    for blk in params["blocks"]:
        d = blk["downsample"]
        y_s = y
        if d > 1:
            n_, c_, l_ = y_s.shape
            y_s = jnp.max(y_s.reshape(n_, c_, l_ // d, d), axis=3)
        if blk["skip_w"] is not None:
            y_s = conv(y_s, blk["skip_w"], 1, 0)
        h = jax.nn.relu(bn(conv(x, blk["conv1_w"], 1, blk["pad1"]), blk["bn1"]))
        s = conv(h, blk["conv2_w"], d, blk["pad2"]) + y_s
        x = jax.nn.relu(bn(s, blk["bn2"]))
        y = s
    n = x.shape[0]
    feats = x.reshape(n, -1)
    nc = params["n_classes"]
    return feats @ params["lin_w_t"][:, :nc] + params["lin_b_p"][:nc]


def _check(params, x, out):
    ref = _reference_forward(params, x.astype(jnp.float32))
    num = float(jnp.linalg.norm(out.astype(jnp.float32) - ref))
    den = float(jnp.linalg.norm(ref)) + 1e-6
    assert num / den < 5e-2, f"relative error {num / den:.4f}"


# ----------------------------------------------------------------------------
if __name__ == "__main__":
    key = jax.random.PRNGKey(0)
    k1, k2 = jax.random.split(key)

    # Test 1: tiny dims -> every block uses the fully fused single-tile kernel.
    params = init_params(k1, (4, 64), [(8, 32), (16, 16)], n_classes=5, kernel_size=5)
    x = jax.random.normal(k2, (2, 4, 64), dtype=jnp.float32)
    fwd = jax.jit(functools.partial(resnet1d_forward, params))
    out = jax.block_until_ready(fwd(x))
    assert out.shape == (2, 5)
    assert bool(jnp.all(jnp.isfinite(out)))
    _check(params, x, out)

    # Test 2: longer sequences -> exercises the L-tiled head/tail fallback path
    # plus a fused final block.
    k3, k4 = jax.random.split(k1)
    params2 = init_params(k3, (2, 2048), [(4, 1024), (8, 512)], n_classes=3, kernel_size=5)
    x2 = jax.random.normal(k4, (2, 2, 2048), dtype=jnp.float32)
    out2 = jax.block_until_ready(jax.jit(functools.partial(resnet1d_forward, params2))(x2))
    assert out2.shape == (2, 3)
    assert bool(jnp.all(jnp.isfinite(out2)))
    _check(params2, x2, out2)

    print("KERNEL_OK")
</pallas_src>

<mosaic_0001>
module attributes {stable_mosaic.version = 11 : i64} {
  func.func @_res_block_kernel(%arg0: i32, %arg1: memref<1x1x8x36xbf16, #tpu.memory_space<vmem>>, %arg2: memref<1x1x8x36xbf16, #tpu.memory_space<vmem>>, %arg3: memref<8x40xbf16, #tpu.memory_space<vmem>>, %arg4: memref<8x1xf32, #tpu.memory_space<vmem>>, %arg5: memref<8x40xbf16, #tpu.memory_space<vmem>>, %arg6: memref<8x1xf32, #tpu.memory_space<vmem>>, %arg7: memref<8x1xf32, #tpu.memory_space<vmem>>, %arg8: memref<1x8x32xbf16, #tpu.memory_space<vmem>>, %arg9: memref<1x8x36xbf16, #tpu.memory_space<vmem>>) attributes {dimension_semantics = [#tpu.dimension_semantics<parallel>], iteration_bounds = array<i64: 2>, scalar_prefetch = 0 : i64, scratch_operands = 0 : i64, tpu.core_type = #tpu.core_type<tc>, window_params = [{transform_indices = @transform_0, window_bounds = array<i64: 1, 1, 8, 36>}, {transform_indices = @transform_1, window_bounds = array<i64: 1, 1, 8, 36>}, {pipeline_mode = #tpu.pipeline_mode<synchronous>, transform_indices = @transform_2, window_bounds = array<i64: 8, 40>}, {pipeline_mode = #tpu.pipeline_mode<synchronous>, transform_indices = @transform_3, window_bounds = array<i64: 8, 1>}, {pipeline_mode = #tpu.pipeline_mode<synchronous>, transform_indices = @transform_4, window_bounds = array<i64: 8, 40>}, {pipeline_mode = #tpu.pipeline_mode<synchronous>, transform_indices = @transform_5, window_bounds = array<i64: 8, 1>}, {pipeline_mode = #tpu.pipeline_mode<synchronous>, transform_indices = @transform_6, window_bounds = array<i64: 8, 1>}, {transform_indices = @transform_7, window_bounds = array<i64: 1, 8, 32>}, {transform_indices = @transform_8, window_bounds = array<i64: 1, 8, 36>}]} {
    %c0 = arith.constant 0 : index
    %c0_0 = arith.constant 0 : index
    %c0_1 = arith.constant 0 : index
    %c0_2 = arith.constant 0 : index
    %0 = vector.load %arg1[%c0, %c0_0, %c0_1, %c0_2] : memref<1x1x8x36xbf16, #tpu.memory_space<vmem>>, vector<1x1x8x32xbf16>
    %1 = vector.shape_cast %0 : vector<1x1x8x32xbf16> to vector<8x32xbf16>
    %c0_3 = arith.constant 0 : index
    %c0_4 = arith.constant 0 : index
    %c0_5 = arith.constant 0 : index
    %c1 = arith.constant 1 : index
    %2 = vector.load %arg1[%c0_3, %c0_4, %c0_5, %c1] : memref<1x1x8x36xbf16, #tpu.memory_space<vmem>>, vector<1x1x8x32xbf16>
    %3 = vector.shape_cast %2 : vector<1x1x8x32xbf16> to vector<8x32xbf16>
    %c0_6 = arith.constant 0 : index
    %c0_7 = arith.constant 0 : index
    %c0_8 = arith.constant 0 : index
    %c2 = arith.constant 2 : index
    %4 = vector.load %arg1[%c0_6, %c0_7, %c0_8, %c2] : memref<1x1x8x36xbf16, #tpu.memory_space<vmem>>, vector<1x1x8x32xbf16>
    %5 = vector.shape_cast %4 : vector<1x1x8x32xbf16> to vector<8x32xbf16>
    %c0_9 = arith.constant 0 : index
    %c0_10 = arith.constant 0 : index
    %c0_11 = arith.constant 0 : index
    %c3 = arith.constant 3 : index
    %6 = vector.load %arg1[%c0_9, %c0_10, %c0_11, %c3] : memref<1x1x8x36xbf16, #tpu.memory_space<vmem>>, vector<1x1x8x32xbf16>
    %7 = vector.shape_cast %6 : vector<1x1x8x32xbf16> to vector<8x32xbf16>
    %c0_12 = arith.constant 0 : index
    %c0_13 = arith.constant 0 : index
    %c0_14 = arith.constant 0 : index
    %c4 = arith.constant 4 : index
    %8 = vector.load %arg1[%c0_12, %c0_13, %c0_14, %c4] : memref<1x1x8x36xbf16, #tpu.memory_space<vmem>>, vector<1x1x8x32xbf16>
    %9 = vector.shape_cast %8 : vector<1x1x8x32xbf16> to vector<8x32xbf16>
    %c0_15 = arith.constant 0 : index
    %c0_16 = arith.constant 0 : index
    %10 = vector.load %arg3[%c0_15, %c0_16] : memref<8x40xbf16, #tpu.memory_space<vmem>>, vector<8x40xbf16>
    %11 = tpu.concatenate %1, %3, %5, %7, %9 in 0 : vector<8x32xbf16>, vector<8x32xbf16>, vector<8x32xbf16>, vector<8x32xbf16>, vector<8x32xbf16> -> vector<40x32xbf16>
    %cst = arith.constant dense<0.000000e+00> : vector<8x32xf32>
    %12 = tpu.matmul %10, %11, %cst {dimension_numbers = #tpu.dot_dimension_numbers<[1], [0], [0], [1], [0, 0, 1, 1], [], []>} : vector<8x40xbf16>, vector<40x32xbf16>, vector<8x32xf32> -> vector<8x32xf32>
    %c0_17 = arith.constant 0 : index
    %c0_18 = arith.constant 0 : index
    %13 = vector.load %arg4[%c0_17, %c0_18] : memref<8x1xf32, #tpu.memory_space<vmem>>, vector<8x1xf32>
    %14 = vector.broadcast %13 : vector<8x1xf32> to vector<8x32xf32>
    %15 = arith.addf %12, %14 : vector<8x32xf32>
    %cst_19 = arith.constant 0.000000e+00 : f32
    %16 = vector.broadcast %cst_19 : f32 to vector<8x32xf32>
    %17 = arith.maximumf %15, %16 : vector<8x32xf32>
    %18 = arith.truncf %17 : vector<8x32xf32> to vector<8x32xbf16>
    %cst_20 = arith.constant 0.000000e+00 : bf16
    %19 = vector.broadcast %cst_20 : bf16 to vector<8x2xbf16>
    %cst_21 = arith.constant 0.000000e+00 : bf16
    %20 = vector.broadcast %cst_21 : bf16 to vector<8x2xbf16>
    %21 = tpu.concatenate %19, %18, %20 in 1 : vector<8x2xbf16>, vector<8x32xbf16>, vector<8x2xbf16> -> vector<8x36xbf16>
    %22 = vector.extract_strided_slice %21 {offsets = [0, 0], sizes = [8, 32], strides = [1, 1]} : vector<8x36xbf16> to vector<8x32xbf16>
    %23 = vector.extract_strided_slice %21 {offsets = [0, 1], sizes = [8, 32], strides = [1, 1]} : vector<8x36xbf16> to vector<8x32xbf16>
    %24 = vector.extract_strided_slice %21 {offsets = [0, 2], sizes = [8, 32], strides = [1, 1]} : vector<8x36xbf16> to vector<8x32xbf16>
    %25 = vector.extract_strided_slice %21 {offsets = [0, 3], sizes = [8, 32], strides = [1, 1]} : vector<8x36xbf16> to vector<8x32xbf16>
    %26 = vector.extract_strided_slice %21 {offsets = [0, 4], sizes = [8, 32], strides = [1, 1]} : vector<8x36xbf16> to vector<8x32xbf16>
    %c0_22 = arith.constant 0 : index
    %c0_23 = arith.constant 0 : index
    %27 = vector.load %arg5[%c0_22, %c0_23] : memref<8x40xbf16, #tpu.memory_space<vmem>>, vector<8x40xbf16>
    %28 = tpu.concatenate %22, %23, %24, %25, %26 in 0 : vector<8x32xbf16>, vector<8x32xbf16>, vector<8x32xbf16>, vector<8x32xbf16>, vector<8x32xbf16> -> vector<40x32xbf16>
    %cst_24 = arith.constant dense<0.000000e+00> : vector<8x32xf32>
    %29 = tpu.matmul %27, %28, %cst_24 {dimension_numbers = #tpu.dot_dimension_numbers<[1], [0], [0], [1], [0, 0, 1, 1], [], []>} : vector<8x40xbf16>, vector<40x32xbf16>, vector<8x32xf32> -> vector<8x32xf32>
    %c0_25 = arith.constant 0 : index
    %c0_26 = arith.constant 0 : index
    %c0_27 = arith.constant 0 : index
    %c2_28 = arith.constant 2 : index
    %30 = vector.load %arg2[%c0_25, %c0_26, %c0_27, %c2_28] : memref<1x1x8x36xbf16, #tpu.memory_space<vmem>>, vector<1x1x8x32xbf16>
    %31 = vector.shape_cast %30 : vector<1x1x8x32xbf16> to vector<8x32xbf16>
    %32 = arith.extf %31 : vector<8x32xbf16> to vector<8x32xf32>
    %33 = arith.addf %29, %32 : vector<8x32xf32>
    %34 = arith.truncf %33 : vector<8x32xf32> to vector<8x32xbf16>
    %c0_29 = arith.constant 0 : index
    %c0_30 = arith.constant 0 : index
    %c0_31 = arith.constant 0 : index
    %35 = vector.load %arg8[%c0_29, %c0_30, %c0_31] : memref<1x8x32xbf16, #tpu.memory_space<vmem>>, vector<1x8x32xbf16>
    %36 = vector.shape_cast %35 : vector<1x8x32xbf16> to vector<8x32xbf16>
    %37 = vector.shape_cast %34 : vector<8x32xbf16> to vector<1x8x32xbf16>
    tpu.vector_store %arg8[%c0_29, %c0_30, %c0_31], %37 {strides = array<i32>} : memref<1x8x32xbf16, #tpu.memory_space<vmem>>, vector<1x8x32xbf16>,
    %c0_32 = arith.constant 0 : index
    %c0_33 = arith.constant 0 : index
    %38 = vector.load %arg6[%c0_32, %c0_33] : memref<8x1xf32, #tpu.memory_space<vmem>>, vector<8x1xf32>
    %39 = vector.broadcast %38 : vector<8x1xf32> to vector<8x32xf32>
    %40 = arith.mulf %33, %39 : vector<8x32xf32>
    %c0_34 = arith.constant 0 : index
    %c0_35 = arith.constant 0 : index
    %41 = vector.load %arg7[%c0_34, %c0_35] : memref<8x1xf32, #tpu.memory_space<vmem>>, vector<8x1xf32>
    %42 = vector.broadcast %41 : vector<8x1xf32> to vector<8x32xf32>
    %43 = arith.addf %40, %42 : vector<8x32xf32>
    %cst_36 = arith.constant 0.000000e+00 : f32
    %44 = vector.broadcast %cst_36 : f32 to vector<8x32xf32>
    %45 = arith.maximumf %43, %44 : vector<8x32xf32>
    %46 = arith.truncf %45 : vector<8x32xf32> to vector<8x32xbf16>
    %cst_37 = arith.constant 0.000000e+00 : bf16
    %47 = vector.broadcast %cst_37 : bf16 to vector<8x2xbf16>
    %48 = tpu.concatenate %47, %46, %47 in 1 : vector<8x2xbf16>, vector<8x32xbf16>, vector<8x2xbf16> -> vector<8x36xbf16>
    %c0_38 = arith.constant 0 : index
    %c0_39 = arith.constant 0 : index
    %c0_40 = arith.constant 0 : index
    %49 = vector.load %arg9[%c0_38, %c0_39, %c0_40] : memref<1x8x36xbf16, #tpu.memory_space<vmem>>, vector<1x8x36xbf16>
    %50 = vector.shape_cast %49 : vector<1x8x36xbf16> to vector<8x36xbf16>
    %51 = vector.shape_cast %48 : vector<8x36xbf16> to vector<1x8x36xbf16>
    tpu.vector_store %arg9[%c0_38, %c0_39, %c0_40], %51 {strides = array<i32>} : memref<1x8x36xbf16, #tpu.memory_space<vmem>>, vector<1x8x36xbf16>,
    return
  }
  func.func @transform_0(%arg0: i32) -> (i32, i32, i32, i32) {
    %c0_i32 = arith.constant 0 : i32
    %c0_i32_0 = arith.constant 0 : i32
    %c0_i32_1 = arith.constant 0 : i32
    %c0_i32_2 = arith.constant 0 : i32
    return %arg0, %c0_i32, %c0_i32_0, %c0_i32_1 : i32, i32, i32, i32
  }
  func.func @transform_1(%arg0: i32) -> (i32, i32, i32, i32) {
    %c0_i32 = arith.constant 0 : i32
    %c0_i32_0 = arith.constant 0 : i32
    %c0_i32_1 = arith.constant 0 : i32
    %c0_i32_2 = arith.constant 0 : i32
    return %arg0, %c0_i32, %c0_i32_0, %c0_i32_1 : i32, i32, i32, i32
  }
  func.func @transform_2(%arg0: i32) -> (i32, i32) {
    %c0_i32 = arith.constant 0 : i32
    %c0_i32_0 = arith.constant 0 : i32
    %c0_i32_1 = arith.constant 0 : i32
    return %c0_i32, %c0_i32_0 : i32, i32
  }
  func.func @transform_3(%arg0: i32) -> (i32, i32) {
    %c0_i32 = arith.constant 0 : i32
    %c0_i32_0 = arith.constant 0 : i32
    %c0_i32_1 = arith.constant 0 : i32
    return %c0_i32, %c0_i32_0 : i32, i32
  }
  func.func @transform_4(%arg0: i32) -> (i32, i32) {
    %c0_i32 = arith.constant 0 : i32
    %c0_i32_0 = arith.constant 0 : i32
    %c0_i32_1 = arith.constant 0 : i32
    return %c0_i32, %c0_i32_0 : i32, i32
  }
  func.func @transform_5(%arg0: i32) -> (i32, i32) {
    %c0_i32 = arith.constant 0 : i32
    %c0_i32_0 = arith.constant 0 : i32
    %c0_i32_1 = arith.constant 0 : i32
    return %c0_i32, %c0_i32_0 : i32, i32
  }
  func.func @transform_6(%arg0: i32) -> (i32, i32) {
    %c0_i32 = arith.constant 0 : i32
    %c0_i32_0 = arith.constant 0 : i32
    %c0_i32_1 = arith.constant 0 : i32
    return %c0_i32, %c0_i32_0 : i32, i32
  }
  func.func @transform_7(%arg0: i32) -> (i32, i32, i32) {
    %c0_i32 = arith.constant 0 : i32
    %c0_i32_0 = arith.constant 0 : i32
    %c0_i32_1 = arith.constant 0 : i32
    return %arg0, %c0_i32, %c0_i32_0 : i32, i32, i32
  }
  func.func @transform_8(%arg0: i32) -> (i32, i32, i32) {
    %c0_i32 = arith.constant 0 : i32
    %c0_i32_0 = arith.constant 0 : i32
    %c0_i32_1 = arith.constant 0 : i32
    return %arg0, %c0_i32, %c0_i32_0 : i32, i32, i32
  }
}

module attributes {stable_mosaic.version = 11 : i64} {
  func.func @_conv_bn_act_kernel(%arg0: i32, %arg1: i32, %arg2: memref<1x2x4x34xbf16, #tpu.memory_space<vmem>>, %arg3: memref<8x20xbf16, #tpu.memory_space<vmem>>, %arg4: memref<8x1xf32, #tpu.memory_space<vmem>>, %arg5: memref<1x8x36xbf16, #tpu.memory_space<vmem>>) attributes {dimension_semantics = [#tpu.dimension_semantics<parallel>, #tpu.dimension_semantics<parallel>], iteration_bounds = array<i64: 2, 1>, scalar_prefetch = 0 : i64, scratch_operands = 0 : i64, tpu.core_type = #tpu.core_type<tc>, window_params = [{transform_indices = @transform_0, window_bounds = array<i64: 1, 2, 4, 34>}, {pipeline_mode = #tpu.pipeline_mode<synchronous>, transform_indices = @transform_1, window_bounds = array<i64: 8, 20>}, {pipeline_mode = #tpu.pipeline_mode<synchronous>, transform_indices = @transform_2, window_bounds = array<i64: 8, 1>}, {transform_indices = @transform_3, window_bounds = array<i64: 1, 8, 36>}]} {
    %c0 = arith.constant 0 : index
    %c0_0 = arith.constant 0 : index
    %c0_1 = arith.constant 0 : index
    %c0_2 = arith.constant 0 : index
    %0 = vector.load %arg2[%c0, %c0_0, %c0_1, %c0_2] : memref<1x2x4x34xbf16, #tpu.memory_space<vmem>>, vector<1x1x4x32xbf16>
    %1 = vector.shape_cast %0 : vector<1x1x4x32xbf16> to vector<4x32xbf16>
    %c0_3 = arith.constant 0 : index
    %c1 = arith.constant 1 : index
    %c0_4 = arith.constant 0 : index
    %c0_5 = arith.constant 0 : index
    %2 = vector.load %arg2[%c0_3, %c1, %c0_4, %c0_5] : memref<1x2x4x34xbf16, #tpu.memory_space<vmem>>, vector<1x1x4x32xbf16>
    %3 = vector.shape_cast %2 : vector<1x1x4x32xbf16> to vector<4x32xbf16>
    %c0_6 = arith.constant 0 : index
    %c0_7 = arith.constant 0 : index
    %c0_8 = arith.constant 0 : index
    %c1_9 = arith.constant 1 : index
    %4 = vector.load %arg2[%c0_6, %c0_7, %c0_8, %c1_9] : memref<1x2x4x34xbf16, #tpu.memory_space<vmem>>, vector<1x1x4x32xbf16>
    %5 = vector.shape_cast %4 : vector<1x1x4x32xbf16> to vector<4x32xbf16>
    %c0_10 = arith.constant 0 : index
    %c1_11 = arith.constant 1 : index
    %c0_12 = arith.constant 0 : index
    %c1_13 = arith.constant 1 : index
    %6 = vector.load %arg2[%c0_10, %c1_11, %c0_12, %c1_13] : memref<1x2x4x34xbf16, #tpu.memory_space<vmem>>, vector<1x1x4x32xbf16>
    %7 = vector.shape_cast %6 : vector<1x1x4x32xbf16> to vector<4x32xbf16>
    %c0_14 = arith.constant 0 : index
    %c0_15 = arith.constant 0 : index
    %c0_16 = arith.constant 0 : index
    %c2 = arith.constant 2 : index
    %8 = vector.load %arg2[%c0_14, %c0_15, %c0_16, %c2] : memref<1x2x4x34xbf16, #tpu.memory_space<vmem>>, vector<1x1x4x32xbf16>
    %9 = vector.shape_cast %8 : vector<1x1x4x32xbf16> to vector<4x32xbf16>
    %10 = tpu.concatenate %1, %3, %5, %7, %9 in 0 : vector<4x32xbf16>, vector<4x32xbf16>, vector<4x32xbf16>, vector<4x32xbf16>, vector<4x32xbf16> -> vector<20x32xbf16>
    %c0_17 = arith.constant 0 : index
    %c0_18 = arith.constant 0 : index
    %11 = vector.load %arg3[%c0_17, %c0_18] : memref<8x20xbf16, #tpu.memory_space<vmem>>, vector<8x20xbf16>
    %cst = arith.constant dense<0.000000e+00> : vector<8x32xf32>
    %12 = tpu.matmul %11, %10, %cst {dimension_numbers = #tpu.dot_dimension_numbers<[1], [0], [0], [1], [0, 0, 1, 1], [], []>} : vector<8x20xbf16>, vector<20x32xbf16>, vector<8x32xf32> -> vector<8x32xf32>
    %c0_19 = arith.constant 0 : index
    %c0_20 = arith.constant 0 : index
    %13 = vector.load %arg4[%c0_19, %c0_20] : memref<8x1xf32, #tpu.memory_space<vmem>>, vector<8x1xf32>
    %14 = vector.broadcast %13 : vector<8x1xf32> to vector<8x32xf32>
    %15 = arith.addf %12, %14 : vector<8x32xf32>
    %16 = arith.truncf %15 : vector<8x32xf32> to vector<8x32xbf16>
    %cst_21 = arith.constant 0.000000e+00 : bf16
    %17 = vector.broadcast %cst_21 : bf16 to vector<8x2xbf16>
    %18 = tpu.concatenate %17, %16, %17 in 1 : vector<8x2xbf16>, vector<8x32xbf16>, vector<8x2xbf16> -> vector<8x36xbf16>
    %c0_22 = arith.constant 0 : index
    %c0_23 = arith.constant 0 : index
    %c0_24 = arith.constant 0 : index
    %19 = vector.load %arg5[%c0_22, %c0_23, %c0_24] : memref<1x8x36xbf16, #tpu.memory_space<vmem>>, vector<1x8x36xbf16>
    %20 = vector.shape_cast %19 : vector<1x8x36xbf16> to vector<8x36xbf16>
    %21 = vector.shape_cast %18 : vector<8x36xbf16> to vector<1x8x36xbf16>
    tpu.vector_store %arg5[%c0_22, %c0_23, %c0_24], %21 {strides = array<i32>} : memref<1x8x36xbf16, #tpu.memory_space<vmem>>, vector<1x8x36xbf16>,
    return
  }
  func.func @transform_0(%arg0: i32, %arg1: i32) -> (i32, i32, i32, i32) {
    %c0_i32 = arith.constant 0 : i32
    %c0_i32_0 = arith.constant 0 : i32
    %c0_i32_1 = arith.constant 0 : i32
    %c0_i32_2 = arith.constant 0 : i32
    return %arg0, %c0_i32, %c0_i32_0, %c0_i32_1 : i32, i32, i32, i32
  }
  func.func @transform_1(%arg0: i32, %arg1: i32) -> (i32, i32) {
    %c0_i32 = arith.constant 0 : i32
    %c0_i32_0 = arith.constant 0 : i32
    %c0_i32_1 = arith.constant 0 : i32
    return %c0_i32, %c0_i32_0 : i32, i32
  }
  func.func @transform_2(%arg0: i32, %arg1: i32) -> (i32, i32) {
    %c0_i32 = arith.constant 0 : i32
    %c0_i32_0 = arith.constant 0 : i32
    %c0_i32_1 = arith.constant 0 : i32
    return %c0_i32, %c0_i32_0 : i32, i32
  }
  func.func @transform_3(%arg0: i32, %arg1: i32) -> (i32, i32, i32) {
    %c0_i32 = arith.constant 0 : i32
    %c0_i32_0 = arith.constant 0 : i32
    %c0_i32_1 = arith.constant 0 : i32
    return %arg0, %c0_i32, %c0_i32_0 : i32, i32, i32
  }
}

module attributes {stable_mosaic.version = 11 : i64} {
  func.func @_res_block_kernel(%arg0: i32, %arg1: memref<1x2x8x18xbf16, #tpu.memory_space<vmem>>, %arg2: memref<1x2x8x16xbf16, #tpu.memory_space<vmem>>, %arg3: memref<16x40xbf16, #tpu.memory_space<vmem>>, %arg4: memref<16x1xf32, #tpu.memory_space<vmem>>, %arg5: memref<16x80xbf16, #tpu.memory_space<vmem>>, %arg6: memref<16x8xbf16, #tpu.memory_space<vmem>>, %arg7: memref<16x1xf32, #tpu.memory_space<vmem>>, %arg8: memref<16x1xf32, #tpu.memory_space<vmem>>, %arg9: memref<1x16x16xbf16, #tpu.memory_space<vmem>>, %arg10: memref<1x16x16xbf16, #tpu.memory_space<vmem>>) attributes {dimension_semantics = [#tpu.dimension_semantics<parallel>], iteration_bounds = array<i64: 2>, scalar_prefetch = 0 : i64, scratch_operands = 0 : i64, tpu.core_type = #tpu.core_type<tc>, window_params = [{transform_indices = @transform_0, window_bounds = array<i64: 1, 2, 8, 18>}, {transform_indices = @transform_1, window_bounds = array<i64: 1, 2, 8, 16>}, {pipeline_mode = #tpu.pipeline_mode<synchronous>, transform_indices = @transform_2, window_bounds = array<i64: 16, 40>}, {pipeline_mode = #tpu.pipeline_mode<synchronous>, transform_indices = @transform_3, window_bounds = array<i64: 16, 1>}, {pipeline_mode = #tpu.pipeline_mode<synchronous>, transform_indices = @transform_4, window_bounds = array<i64: 16, 80>}, {pipeline_mode = #tpu.pipeline_mode<synchronous>, transform_indices = @transform_5, window_bounds = array<i64: 16, 8>}, {pipeline_mode = #tpu.pipeline_mode<synchronous>, transform_indices = @transform_6, window_bounds = array<i64: 16, 1>}, {pipeline_mode = #tpu.pipeline_mode<synchronous>, transform_indices = @transform_7, window_bounds = array<i64: 16, 1>}, {transform_indices = @transform_8, window_bounds = array<i64: 1, 16, 16>}, {transform_indices = @transform_9, window_bounds = array<i64: 1, 16, 16>}]} {
    %c0 = arith.constant 0 : index
    %c0_0 = arith.constant 0 : index
    %c0_1 = arith.constant 0 : index
    %c0_2 = arith.constant 0 : index
    %0 = vector.load %arg1[%c0, %c0_0, %c0_1, %c0_2] : memref<1x2x8x18xbf16, #tpu.memory_space<vmem>>, vector<1x1x8x16xbf16>
    %1 = vector.shape_cast %0 : vector<1x1x8x16xbf16> to vector<8x16xbf16>
    %c0_3 = arith.constant 0 : index
    %c1 = arith.constant 1 : index
    %c0_4 = arith.constant 0 : index
    %c0_5 = arith.constant 0 : index
    %2 = vector.load %arg1[%c0_3, %c1, %c0_4, %c0_5] : memref<1x2x8x18xbf16, #tpu.memory_space<vmem>>, vector<1x1x8x16xbf16>
    %3 = vector.shape_cast %2 : vector<1x1x8x16xbf16> to vector<8x16xbf16>
    %c0_6 = arith.constant 0 : index
    %c0_7 = arith.constant 0 : index
    %c0_8 = arith.constant 0 : index
    %c1_9 = arith.constant 1 : index
    %4 = vector.load %arg1[%c0_6, %c0_7, %c0_8, %c1_9] : memref<1x2x8x18xbf16, #tpu.memory_space<vmem>>, vector<1x1x8x16xbf16>
    %5 = vector.shape_cast %4 : vector<1x1x8x16xbf16> to vector<8x16xbf16>
    %c0_10 = arith.constant 0 : index
    %c1_11 = arith.constant 1 : index
    %c0_12 = arith.constant 0 : index
    %c1_13 = arith.constant 1 : index
    %6 = vector.load %arg1[%c0_10, %c1_11, %c0_12, %c1_13] : memref<1x2x8x18xbf16, #tpu.memory_space<vmem>>, vector<1x1x8x16xbf16>
    %7 = vector.shape_cast %6 : vector<1x1x8x16xbf16> to vector<8x16xbf16>
    %c0_14 = arith.constant 0 : index
    %c0_15 = arith.constant 0 : index
    %c0_16 = arith.constant 0 : index
    %c2 = arith.constant 2 : index
    %8 = vector.load %arg1[%c0_14, %c0_15, %c0_16, %c2] : memref<1x2x8x18xbf16, #tpu.memory_space<vmem>>, vector<1x1x8x16xbf16>
    %9 = vector.shape_cast %8 : vector<1x1x8x16xbf16> to vector<8x16xbf16>
    %c0_17 = arith.constant 0 : index
    %c0_18 = arith.constant 0 : index
    %10 = vector.load %arg3[%c0_17, %c0_18] : memref<16x40xbf16, #tpu.memory_space<vmem>>, vector<16x40xbf16>
    %11 = tpu.concatenate %1, %3, %5, %7, %9 in 0 : vector<8x16xbf16>, vector<8x16xbf16>, vector<8x16xbf16>, vector<8x16xbf16>, vector<8x16xbf16> -> vector<40x16xbf16>
    %cst = arith.constant dense<0.000000e+00> : vector<16x16xf32>
    %12 = tpu.matmul %10, %11, %cst {dimension_numbers = #tpu.dot_dimension_numbers<[1], [0], [0], [1], [0, 0, 1, 1], [], []>} : vector<16x40xbf16>, vector<40x16xbf16>, vector<16x16xf32> -> vector<16x16xf32>
    %c0_19 = arith.constant 0 : index
    %c0_20 = arith.constant 0 : index
    %13 = vector.load %arg4[%c0_19, %c0_20] : memref<16x1xf32, #tpu.memory_space<vmem>>, vector<16x1xf32>
    %14 = vector.broadcast %13 : vector<16x1xf32> to vector<16x16xf32>
    %15 = arith.addf %12, %14 : vector<16x16xf32>
    %cst_21 = arith.constant 0.000000e+00 : f32
    %16 = vector.broadcast %cst_21 : f32 to vector<16x16xf32>
    %17 = arith.maximumf %15, %16 : vector<16x16xf32>
    %18 = arith.truncf %17 : vector<16x16xf32> to vector<16x16xbf16>
    %cst_22 = arith.constant 0.000000e+00 : bf16
    %19 = vector.broadcast %cst_22 : bf16 to vector<16x1xbf16>
    %cst_23 = arith.constant 0.000000e+00 : bf16
    %20 = vector.broadcast %cst_23 : bf16 to vector<16x1xbf16>
    %21 = tpu.concatenate %19, %18, %20 in 1 : vector<16x1xbf16>, vector<16x16xbf16>, vector<16x1xbf16> -> vector<16x18xbf16>
    %c0_24 = arith.constant 0 : index
    %c1_25 = arith.constant 1 : index
    %c0_26 = arith.constant 0 : index
    %c0_27 = arith.constant 0 : index
    %22 = vector.load %arg1[%c0_24, %c1_25, %c0_26, %c0_27] : memref<1x2x8x18xbf16, #tpu.memory_space<vmem>>, vector<1x1x8x16xbf16>
    %23 = vector.shape_cast %22 : vector<1x1x8x16xbf16> to vector<8x16xbf16>
    %c0_28 = arith.constant 0 : index
    %c0_29 = arith.constant 0 : index
    %c0_30 = arith.constant 0 : index
    %c1_31 = arith.constant 1 : index
    %24 = vector.load %arg1[%c0_28, %c0_29, %c0_30, %c1_31] : memref<1x2x8x18xbf16, #tpu.memory_space<vmem>>, vector<1x1x8x16xbf16>
    %25 = vector.shape_cast %24 : vector<1x1x8x16xbf16> to vector<8x16xbf16>
    %c0_32 = arith.constant 0 : index
    %c1_33 = arith.constant 1 : index
    %c0_34 = arith.constant 0 : index
    %c1_35 = arith.constant 1 : index
    %26 = vector.load %arg1[%c0_32, %c1_33, %c0_34, %c1_35] : memref<1x2x8x18xbf16, #tpu.memory_space<vmem>>, vector<1x1x8x16xbf16>
    %27 = vector.shape_cast %26 : vector<1x1x8x16xbf16> to vector<8x16xbf16>
    %c0_36 = arith.constant 0 : index
    %c0_37 = arith.constant 0 : index
    %c0_38 = arith.constant 0 : index
    %c2_39 = arith.constant 2 : index
    %28 = vector.load %arg1[%c0_36, %c0_37, %c0_38, %c2_39] : memref<1x2x8x18xbf16, #tpu.memory_space<vmem>>, vector<1x1x8x16xbf16>
    %29 = vector.shape_cast %28 : vector<1x1x8x16xbf16> to vector<8x16xbf16>
    %c0_40 = arith.constant 0 : index
    %c1_41 = arith.constant 1 : index
    %c0_42 = arith.constant 0 : index
    %c2_43 = arith.constant 2 : index
    %30 = vector.load %arg1[%c0_40, %c1_41, %c0_42, %c2_43] : memref<1x2x8x18xbf16, #tpu.memory_space<vmem>>, vector<1x1x8x16xbf16>
    %31 = vector.shape_cast %30 : vector<1x1x8x16xbf16> to vector<8x16xbf16>
    %c0_44 = arith.constant 0 : index
    %c0_45 = arith.constant 0 : index
    %32 = vector.load %arg3[%c0_44, %c0_45] : memref<16x40xbf16, #tpu.memory_space<vmem>>, vector<16x40xbf16>
    %33 = tpu.concatenate %23, %25, %27, %29, %31 in 0 : vector<8x16xbf16>, vector<8x16xbf16>, vector<8x16xbf16>, vector<8x16xbf16>, vector<8x16xbf16> -> vector<40x16xbf16>
    %cst_46 = arith.constant dense<0.000000e+00> : vector<16x16xf32>
    %34 = tpu.matmul %32, %33, %cst_46 {dimension_numbers = #tpu.dot_dimension_numbers<[1], [0], [0], [1], [0, 0, 1, 1], [], []>} : vector<16x40xbf16>, vector<40x16xbf16>, vector<16x16xf32> -> vector<16x16xf32>
    %c0_47 = arith.constant 0 : index
    %c0_48 = arith.constant 0 : index
    %35 = vector.load %arg4[%c0_47, %c0_48] : memref<16x1xf32, #tpu.memory_space<vmem>>, vector<16x1xf32>
    %36 = vector.broadcast %35 : vector<16x1xf32> to vector<16x16xf32>
    %37 = arith.addf %34, %36 : vector<16x16xf32>
    %cst_49 = arith.constant 0.000000e+00 : f32
    %38 = vector.broadcast %cst_49 : f32 to vector<16x16xf32>
    %39 = arith.maximumf %37, %38 : vector<16x16xf32>
    %40 = arith.truncf %39 : vector<16x16xf32> to vector<16x16xbf16>
    %cst_50 = arith.constant 0.000000e+00 : bf16
    %41 = vector.broadcast %cst_50 : bf16 to vector<16x1xbf16>
    %cst_51 = arith.constant 0.000000e+00 : bf16
    %42 = vector.broadcast %cst_51 : bf16 to vector<16x1xbf16>
    %43 = tpu.concatenate %41, %40, %42 in 1 : vector<16x1xbf16>, vector<16x16xbf16>, vector<16x1xbf16> -> vector<16x18xbf16>
    %44 = vector.extract_strided_slice %21 {offsets = [0, 0], sizes = [16, 16], strides = [1, 1]} : vector<16x18xbf16> to vector<16x16xbf16>
    %45 = vector.extract_strided_slice %43 {offsets = [0, 0], sizes = [16, 16], strides = [1, 1]} : vector<16x18xbf16> to vector<16x16xbf16>
    %46 = vector.extract_strided_slice %21 {offsets = [0, 1], sizes = [16, 16], strides = [1, 1]} : vector<16x18xbf16> to vector<16x16xbf16>
    %47 = vector.extract_strided_slice %43 {offsets = [0, 1], sizes = [16, 16], strides = [1, 1]} : vector<16x18xbf16> to vector<16x16xbf16>
    %48 = vector.extract_strided_slice %21 {offsets = [0, 2], sizes = [16, 16], strides = [1, 1]} : vector<16x18xbf16> to vector<16x16xbf16>
    %c0_52 = arith.constant 0 : index
    %c0_53 = arith.constant 0 : index
    %49 = vector.load %arg5[%c0_52, %c0_53] : memref<16x80xbf16, #tpu.memory_space<vmem>>, vector<16x80xbf16>
    %50 = tpu.concatenate %44, %45, %46, %47, %48 in 0 : vector<16x16xbf16>, vector<16x16xbf16>, vector<16x16xbf16>, vector<16x16xbf16>, vector<16x16xbf16> -> vector<80x16xbf16>
    %cst_54 = arith.constant dense<0.000000e+00> : vector<16x16xf32>
    %51 = tpu.matmul %49, %50, %cst_54 {dimension_numbers = #tpu.dot_dimension_numbers<[1], [0], [0], [1], [0, 0, 1, 1], [], []>} : vector<16x80xbf16>, vector<80x16xbf16>, vector<16x16xf32> -> vector<16x16xf32>
    %c0_55 = arith.constant 0 : index
    %c0_56 = arith.constant 0 : index
    %c0_57 = arith.constant 0 : index
    %c0_58 = arith.constant 0 : index
    %52 = vector.load %arg2[%c0_55, %c0_56, %c0_57, %c0_58] : memref<1x2x8x16xbf16, #tpu.memory_space<vmem>>, vector<1x1x8x16xbf16>
    %53 = vector.shape_cast %52 : vector<1x1x8x16xbf16> to vector<8x16xbf16>
    %c0_59 = arith.constant 0 : index
    %c1_60 = arith.constant 1 : index
    %c0_61 = arith.constant 0 : index
    %c0_62 = arith.constant 0 : index
    %54 = vector.load %arg2[%c0_59, %c1_60, %c0_61, %c0_62] : memref<1x2x8x16xbf16, #tpu.memory_space<vmem>>, vector<1x1x8x16xbf16>
    %55 = vector.shape_cast %54 : vector<1x1x8x16xbf16> to vector<8x16xbf16>
    %56 = arith.maximumf %53, %55 : vector<8x16xbf16>
    %c0_63 = arith.constant 0 : index
    %c0_64 = arith.constant 0 : index
    %57 = vector.load %arg6[%c0_63, %c0_64] : memref<16x8xbf16, #tpu.memory_space<vmem>>, vector<16x8xbf16>
    %cst_65 = arith.constant dense<0.000000e+00> : vector<16x16xf32>
    %58 = tpu.matmul %57, %56, %cst_65 {dimension_numbers = #tpu.dot_dimension_numbers<[1], [0], [0], [1], [0, 0, 1, 1], [], []>} : vector<16x8xbf16>, vector<8x16xbf16>, vector<16x16xf32> -> vector<16x16xf32>
    %59 = arith.addf %51, %58 : vector<16x16xf32>
    %60 = arith.truncf %59 : vector<16x16xf32> to vector<16x16xbf16>
    %c0_66 = arith.constant 0 : index
    %c0_67 = arith.constant 0 : index
    %c0_68 = arith.constant 0 : index
    %61 = vector.load %arg9[%c0_66, %c0_67, %c0_68] : memref<1x16x16xbf16, #tpu.memory_space<vmem>>, vector<1x16x16xbf16>
    %62 = vector.shape_cast %61 : vector<1x16x16xbf16> to vector<16x16xbf16>
    %63 = vector.shape_cast %60 : vector<16x16xbf16> to vector<1x16x16xbf16>
    tpu.vector_store %arg9[%c0_66, %c0_67, %c0_68], %63 {strides = array<i32>} : memref<1x16x16xbf16, #tpu.memory_space<vmem>>, vector<1x16x16xbf16>,
    %c0_69 = arith.constant 0 : index
    %c0_70 = arith.constant 0 : index
    %64 = vector.load %arg7[%c0_69, %c0_70] : memref<16x1xf32, #tpu.memory_space<vmem>>, vector<16x1xf32>
    %65 = vector.broadcast %64 : vector<16x1xf32> to vector<16x16xf32>
    %66 = arith.mulf %59, %65 : vector<16x16xf32>
    %c0_71 = arith.constant 0 : index
    %c0_72 = arith.constant 0 : index
    %67 = vector.load %arg8[%c0_71, %c0_72] : memref<16x1xf32, #tpu.memory_space<vmem>>, vector<16x1xf32>
    %68 = vector.broadcast %67 : vector<16x1xf32> to vector<16x16xf32>
    %69 = arith.addf %66, %68 : vector<16x16xf32>
    %cst_73 = arith.constant 0.000000e+00 : f32
    %70 = vector.broadcast %cst_73 : f32 to vector<16x16xf32>
    %71 = arith.maximumf %69, %70 : vector<16x16xf32>
    %72 = arith.truncf %71 : vector<16x16xf32> to vector<16x16xbf16>
    %c0_74 = arith.constant 0 : index
    %c0_75 = arith.constant 0 : index
    %c0_76 = arith.constant 0 : index
    %73 = vector.load %arg10[%c0_74, %c0_75, %c0_76] : memref<1x16x16xbf16, #tpu.memory_space<vmem>>, vector<1x16x16xbf16>
    %74 = vector.shape_cast %73 : vector<1x16x16xbf16> to vector<16x16xbf16>
    %75 = vector.shape_cast %72 : vector<16x16xbf16> to vector<1x16x16xbf16>
    tpu.vector_store %arg10[%c0_74, %c0_75, %c0_76], %75 {strides = array<i32>} : memref<1x16x16xbf16, #tpu.memory_space<vmem>>, vector<1x16x16xbf16>,
    return
  }
  func.func @transform_0(%arg0: i32) -> (i32, i32, i32, i32) {
    %c0_i32 = arith.constant 0 : i32
    %c0_i32_0 = arith.constant 0 : i32
    %c0_i32_1 = arith.constant 0 : i32
    %c0_i32_2 = arith.constant 0 : i32
    return %arg0, %c0_i32, %c0_i32_0, %c0_i32_1 : i32, i32, i32, i32
  }
  func.func @transform_1(%arg0: i32) -> (i32, i32, i32, i32) {
    %c0_i32 = arith.constant 0 : i32
    %c0_i32_0 = arith.constant 0 : i32
    %c0_i32_1 = arith.constant 0 : i32
    %c0_i32_2 = arith.constant 0 : i32
    return %arg0, %c0_i32, %c0_i32_0, %c0_i32_1 : i32, i32, i32, i32
  }
  func.func @transform_2(%arg0: i32) -> (i32, i32) {
    %c0_i32 = arith.constant 0 : i32
    %c0_i32_0 = arith.constant 0 : i32
    %c0_i32_1 = arith.constant 0 : i32
    return %c0_i32, %c0_i32_0 : i32, i32
  }
  func.func @transform_3(%arg0: i32) -> (i32, i32) {
    %c0_i32 = arith.constant 0 : i32
    %c0_i32_0 = arith.constant 0 : i32
    %c0_i32_1 = arith.constant 0 : i32
    return %c0_i32, %c0_i32_0 : i32, i32
  }
  func.func @transform_4(%arg0: i32) -> (i32, i32) {
    %c0_i32 = arith.constant 0 : i32
    %c0_i32_0 = arith.constant 0 : i32
    %c0_i32_1 = arith.constant 0 : i32
    return %c0_i32, %c0_i32_0 : i32, i32
  }
  func.func @transform_5(%arg0: i32) -> (i32, i32) {
    %c0_i32 = arith.constant 0 : i32
    %c0_i32_0 = arith.constant 0 : i32
    %c0_i32_1 = arith.constant 0 : i32
    return %c0_i32, %c0_i32_0 : i32, i32
  }
  func.func @transform_6(%arg0: i32) -> (i32, i32) {
    %c0_i32 = arith.constant 0 : i32
    %c0_i32_0 = arith.constant 0 : i32
    %c0_i32_1 = arith.constant 0 : i32
    return %c0_i32, %c0_i32_0 : i32, i32
  }
  func.func @transform_7(%arg0: i32) -> (i32, i32) {
    %c0_i32 = arith.constant 0 : i32
    %c0_i32_0 = arith.constant 0 : i32
    %c0_i32_1 = arith.constant 0 : i32
    return %c0_i32, %c0_i32_0 : i32, i32
  }
  func.func @transform_8(%arg0: i32) -> (i32, i32, i32) {
    %c0_i32 = arith.constant 0 : i32
    %c0_i32_0 = arith.constant 0 : i32
    %c0_i32_1 = arith.constant 0 : i32
    return %arg0, %c0_i32, %c0_i32_0 : i32, i32, i32
  }
  func.func @transform_9(%arg0: i32) -> (i32, i32, i32) {
    %c0_i32 = arith.constant 0 : i32
    %c0_i32_0 = arith.constant 0 : i32
    %c0_i32_1 = arith.constant 0 : i32
    return %arg0, %c0_i32, %c0_i32_0 : i32, i32, i32
  }
}

module attributes {stable_mosaic.version = 11 : i64} {
  func.func @_linear_kernel(%arg0: memref<8x256xf32, #tpu.memory_space<vmem>>, %arg1: memref<256x128xf32, #tpu.memory_space<vmem>>, %arg2: memref<1x128xf32, #tpu.memory_space<vmem>>, %arg3: memref<8x128xf32, #tpu.memory_space<vmem>>) attributes {dimension_semantics = [], scalar_prefetch = 0 : i64, scratch_operands = 0 : i64, tpu.core_type = #tpu.core_type<tc>} {
    %c0 = arith.constant 0 : index
    %c0_0 = arith.constant 0 : index
    %0 = vector.load %arg0[%c0, %c0_0] : memref<8x256xf32, #tpu.memory_space<vmem>>, vector<8x256xf32>
    %c0_1 = arith.constant 0 : index
    %c0_2 = arith.constant 0 : index
    %1 = vector.load %arg1[%c0_1, %c0_2] : memref<256x128xf32, #tpu.memory_space<vmem>>, vector<256x128xf32>
    %cst = arith.constant dense<0.000000e+00> : vector<8x128xf32>
    %2 = tpu.matmul %0, %1, %cst {dimension_numbers = #tpu.dot_dimension_numbers<[1], [0], [0], [1], [0, 0, 1, 1], [], []>} : vector<8x256xf32>, vector<256x128xf32>, vector<8x128xf32> -> vector<8x128xf32>
    %c0_3 = arith.constant 0 : index
    %c0_4 = arith.constant 0 : index
    %3 = vector.load %arg2[%c0_3, %c0_4] : memref<1x128xf32, #tpu.memory_space<vmem>>, vector<1x128xf32>
    %4 = vector.broadcast %3 : vector<1x128xf32> to vector<8x128xf32>
    %5 = arith.addf %2, %4 : vector<8x128xf32>
    %c0_5 = arith.constant 0 : index
    %c0_6 = arith.constant 0 : index
    %6 = vector.load %arg3[%c0_5, %c0_6] : memref<8x128xf32, #tpu.memory_space<vmem>>, vector<8x128xf32>
    tpu.vector_store %arg3[%c0_5, %c0_6], %5 {strides = array<i32>} : memref<8x128xf32, #tpu.memory_space<vmem>>, vector<8x128xf32>,
    return
  }
}

</mosaic_0001>

<llo_original>
// kernel: resnet1d_forward.5
$region0: #{resnet1d_forward.5}
  #allocation0 [shape = 'u32[]', space=smem, size = 0x4, offset = 0x4, fixed_abs, tag = 'smem constant byte address 0x4 - core index']
  #allocation1 [shape = 'u32[72,128]{1,0:T(1,128)}', space=vmem, size = 0x9000, scoped, tag = 'internal scratch']
  %s0 = inlined_call_operand.vmem [shape: bf16[2,1,8,36], index: 0, kind: input, shape index: {}, may-alias: {0,1}]
  %s1 = inlined_call_operand.vmem [shape: bf16[2,1,8,36], index: 1, kind: input, shape index: {}, may-alias: {0,1}]
  %s2 = inlined_call_operand.hbm [shape: bf16[8,40], index: 2, kind: input, shape index: {}]
  %s3 = inlined_call_operand.hbm [shape: f32[8,1], index: 3, kind: input, shape index: {}]
  %s4 = inlined_call_operand.hbm [shape: bf16[8,40], index: 4, kind: input, shape index: {}]
  %s5 = inlined_call_operand.hbm [shape: f32[8,1], index: 5, kind: input, shape index: {}]
  %s6 = inlined_call_operand.hbm [shape: f32[8,1], index: 6, kind: input, shape index: {}]
  %s7 = inlined_call_operand.vmem [shape: bf16[2,8,32], index: 7, kind: output, shape index: {0}]
  %s8 = inlined_call_operand.vmem [shape: bf16[2,8,36], index: 8, kind: output, shape index: {1}]
  %9 = xla_tuple %s7, %s8
  %s10 = sld [smem:[#allocation0]]
  $region89: #{resnet1d_forward.5} parent=0
    _
  %s12 = ssub.s32 1, %s10
  %s13 = scalar_select 0, %s12, %s10
  $region1: #{resnet1d_forward.5} parent=0
    #allocation2 [shape = 'u8[2048]{0}', space=vmem, size = 0x800, scoped, tag = 'input window, operand 2, single buffered']
    #allocation3 [shape = 's32[2]{0}', space=sflag, size = 0x8, scoped, tag = 'scoped memory for resnet1d_forward.5']
    #allocation4 [shape = 'u8[4096]{0}', space=vmem, size = 0x1000, scoped, tag = 'input window, operand 3, single buffered']
    #allocation5 [shape = 's32[1]{0}', space=sflag, size = 0x4, scoped, tag = 'scoped memory for resnet1d_forward.5']
    #allocation6 [shape = 'u8[2048]{0}', space=vmem, size = 0x800, scoped, tag = 'input window, operand 4, single buffered']
    #allocation7 [shape = 'u8[4096]{0}', space=vmem, size = 0x1000, scoped, tag = 'input window, operand 5, single buffered']
    #allocation8 [shape = 's32[1]{0}', space=sflag, size = 0x4, scoped, tag = 'scoped memory for resnet1d_forward.5']
    #allocation9 [shape = 'u8[4096]{0}', space=vmem, size = 0x1000, scoped, tag = 'input window, operand 6, single buffered']
    %14 = vsyncpa [#allocation3], 0
    %15 = vsyncpa [#allocation5], 0
    %16 = vsyncpa [#allocation8], 0
    loop: start=0, step=1, limit=4
    $region2: #{resnet1d_forward.5} parent=1 // loop_pre_header
      _
    $region3: #{resnet1d_forward.5} parent=1 // loop_header
      %s18 = sphi 0, %s22
      %p19 = scmp.ge.s32.totalorder %s18, 4
      %s28 = sphi 0, %s30
      %s31 = sphi 0, %s28
      %s32 = sphi 0, %s31
      %s48 = sphi 0, %s32
      %s54 = sphi 0, %s56
      %s57 = sphi 0, %s54
      %s58 = sphi 0, %s57
      %s74 = sphi 0, %s58
      %s78 = sphi 0, %s78
      %s80 = sphi 0, %s78
      %s81 = sphi 0, %s80
      %s95 = sphi 0, %s81
      %s99 = sphi 0, %s99
      %s101 = sphi 0, %s99
      %s102 = sphi 0, %s101
      %s116 = sphi 0, %s102
      %s120 = sphi 0, %s120
      %s122 = sphi 0, %s120
      %s123 = sphi 0, %s122
      %s137 = sphi 0, %s123
      %s141 = sphi 0, %s141
      %s143 = sphi 0, %s141
      %s144 = sphi 0, %s143
      %s158 = sphi 0, %s144
      %s162 = sphi 0, %s162
      %s164 = sphi 0, %s162
      %s165 = sphi 0, %s164
      %s179 = sphi 0, %s165
      %s185 = sphi 0, %s187
      %s188 = sphi 0, %s185
      %s189 = sphi 0, %s188
      %s205 = sphi 0, %s189
      %s211 = sphi 0, %s213
      %s214 = sphi 0, %s211
      %s215 = sphi 0, %s214
      %s231 = sphi 0, %s215
    $region4: #{resnet1d_forward.5} parent=1 // loop_header_branch
      %21 = sbr.rel (%p19) target = $region8
    $region5: #{resnet1d_forward.5} parent=1 // loop_body
      %s23 = ssub.s32 %s18, 1
      %s24 = ssub.s32 %s18, 2
      %s25 = sadd.s32 %s18, 1
      %s26 = ssub.s32 %s18, %s25
      %p27 = scmp.eq.s32.totalorder %s26, 0
      %s29 = sadd.s32 %s28, 1
      %s30 = scalar_select %p27, %s28, %s29
      %p33 = pneg %p27
      %p34 = scmp.eq.s32.totalorder %s18, 1
      %p35 = por %p33, %p34
      %p36 = scmp.ne.s32.totalorder %s28, %s31
      %p37 = scmp.eq.s32.totalorder %s18, 0
      %p38 = por %p36, %p37
      %p39 = scmp.ne.s32.totalorder %s28, %s31
      %p40 = scmp.eq.s32.totalorder %s23, 1
      %p41 = por %p39, %p40
      %p42 = scmp.ne.s32.totalorder %s31, %s32
      %p43 = scmp.eq.s32.totalorder %s23, 0
      %p44 = por %p42, %p43
      %p45 = scmp.ne.s32.totalorder %s31, %s32
      %p46 = scmp.eq.s32.totalorder %s24, 1
      %p47 = por %p45, %p46
      %p49 = scmp.ne.s32.totalorder %s32, %s48
      %p50 = scmp.eq.s32.totalorder %s24, 0
      %p51 = por %p49, %p50
      %s52 = ssub.s32 %s18, %s25
      %p53 = scmp.eq.s32.totalorder %s52, 0
      %s55 = sadd.s32 %s54, 1
      %s56 = scalar_select %p53, %s54, %s55
      %p59 = pneg %p53
      %p60 = scmp.eq.s32.totalorder %s18, 1
      %p61 = por %p59, %p60
      %p62 = scmp.ne.s32.totalorder %s54, %s57
      %p63 = scmp.eq.s32.totalorder %s18, 0
      %p64 = por %p62, %p63
      %p65 = scmp.ne.s32.totalorder %s54, %s57
      %p66 = scmp.eq.s32.totalorder %s23, 1
      %p67 = por %p65, %p66
      %p68 = scmp.ne.s32.totalorder %s57, %s58
      %p69 = scmp.eq.s32.totalorder %s23, 0
      %p70 = por %p68, %p69
      %p71 = scmp.ne.s32.totalorder %s57, %s58
      %p72 = scmp.eq.s32.totalorder %s24, 1
      %p73 = por %p71, %p72
      %p75 = scmp.ne.s32.totalorder %s58, %s74
      %p76 = scmp.eq.s32.totalorder %s24, 0
      %p77 = por %p75, %p76
      %s79 = sadd.s32 %s78, 1
      %p82 = scmp.eq.s32.totalorder %s18, 1
      %p83 = scmp.ne.s32.totalorder %s78, %s80
      %p84 = scmp.eq.s32.totalorder %s18, 0
      %p85 = por %p83, %p84
      %p86 = scmp.ne.s32.totalorder %s78, %s80
      %p87 = scmp.eq.s32.totalorder %s23, 1
      %p88 = por %p86, %p87
      %p89 = scmp.ne.s32.totalorder %s80, %s81
      %p90 = scmp.eq.s32.totalorder %s23, 0
      %p91 = por %p89, %p90
      %p92 = scmp.ne.s32.totalorder %s80, %s81
      %p93 = scmp.eq.s32.totalorder %s24, 1
      %p94 = por %p92, %p93
      %p96 = scmp.ne.s32.totalorder %s81, %s95
      %p97 = scmp.eq.s32.totalorder %s24, 0
      %p98 = por %p96, %p97
      %s100 = sadd.s32 %s99, 1
      %p103 = scmp.eq.s32.totalorder %s18, 1
      %p104 = scmp.ne.s32.totalorder %s99, %s101
      %p105 = scmp.eq.s32.totalorder %s18, 0
      %p106 = por %p104, %p105
      %p107 = scmp.ne.s32.totalorder %s99, %s101
      %p108 = scmp.eq.s32.totalorder %s23, 1
      %p109 = por %p107, %p108
      %p110 = scmp.ne.s32.totalorder %s101, %s102
      %p111 = scmp.eq.s32.totalorder %s23, 0
      %p112 = por %p110, %p111
      %p113 = scmp.ne.s32.totalorder %s101, %s102
      %p114 = scmp.eq.s32.totalorder %s24, 1
      %p115 = por %p113, %p114
      %p117 = scmp.ne.s32.totalorder %s102, %s116
      %p118 = scmp.eq.s32.totalorder %s24, 0
      %p119 = por %p117, %p118
      %s121 = sadd.s32 %s120, 1
      %p124 = scmp.eq.s32.totalorder %s18, 1
      %p125 = scmp.ne.s32.totalorder %s120, %s122
      %p126 = scmp.eq.s32.totalorder %s18, 0
      %p127 = por %p125, %p126
      %p128 = scmp.ne.s32.totalorder %s120, %s122
      %p129 = scmp.eq.s32.totalorder %s23, 1
      %p130 = por %p128, %p129
      %p131 = scmp.ne.s32.totalorder %s122, %s123
      %p132 = scmp.eq.s32.totalorder %s23, 0
      %p133 = por %p131, %p132
      %p134 = scmp.ne.s32.totalorder %s122, %s123
      %p135 = scmp.eq.s32.totalorder %s24, 1
      %p136 = por %p134, %p135
      %p138 = scmp.ne.s32.totalorder %s123, %s137
      %p139 = scmp.eq.s32.totalorder %s24, 0
      %p140 = por %p138, %p139
      %s142 = sadd.s32 %s141, 1
      %p145 = scmp.eq.s32.totalorder %s18, 1
      %p146 = scmp.ne.s32.totalorder %s141, %s143
      %p147 = scmp.eq.s32.totalorder %s18, 0
      %p148 = por %p146, %p147
      %p149 = scmp.ne.s32.totalorder %s141, %s143
      %p150 = scmp.eq.s32.totalorder %s23, 1
      %p151 = por %p149, %p150
      %p152 = scmp.ne.s32.totalorder %s143, %s144
      %p153 = scmp.eq.s32.totalorder %s23, 0
      %p154 = por %p152, %p153
      %p155 = scmp.ne.s32.totalorder %s143, %s144
      %p156 = scmp.eq.s32.totalorder %s24, 1
      %p157 = por %p155, %p156
      %p159 = scmp.ne.s32.totalorder %s144, %s158
      %p160 = scmp.eq.s32.totalorder %s24, 0
      %p161 = por %p159, %p160
      %s163 = sadd.s32 %s162, 1
      %p166 = scmp.eq.s32.totalorder %s18, 1
      %p167 = scmp.ne.s32.totalorder %s162, %s164
      %p168 = scmp.eq.s32.totalorder %s18, 0
      %p169 = por %p167, %p168
      %p170 = scmp.ne.s32.totalorder %s162, %s164
      %p171 = scmp.eq.s32.totalorder %s23, 1
      %p172 = por %p170, %p171
      %p173 = scmp.ne.s32.totalorder %s164, %s165
      %p174 = scmp.eq.s32.totalorder %s23, 0
      %p175 = por %p173, %p174
      %p176 = scmp.ne.s32.totalorder %s164, %s165
      %p177 = scmp.eq.s32.totalorder %s24, 1
      %p178 = por %p176, %p177
      %p180 = scmp.ne.s32.totalorder %s165, %s179
      %p181 = scmp.eq.s32.totalorder %s24, 0
      %p182 = por %p180, %p181
      %s183 = ssub.s32 %s18, %s25
      %p184 = scmp.eq.s32.totalorder %s183, 0
      %s186 = sadd.s32 %s185, 1
      %s187 = scalar_select %p184, %s185, %s186
      %p190 = pneg %p184
      %p191 = scmp.eq.s32.totalorder %s18, 1
      %p192 = por %p190, %p191
      %p193 = scmp.ne.s32.totalorder %s185, %s188
      %p194 = scmp.eq.s32.totalorder %s18, 0
      %p195 = por %p193, %p194
      %p196 = scmp.ne.s32.totalorder %s185, %s188
      %p197 = scmp.eq.s32.totalorder %s23, 1
      %p198 = por %p196, %p197
      %p199 = scmp.ne.s32.totalorder %s188, %s189
      %p200 = scmp.eq.s32.totalorder %s23, 0
      %p201 = por %p199, %p200
      %p202 = scmp.ne.s32.totalorder %s188, %s189
      %p203 = scmp.eq.s32.totalorder %s24, 1
      %p204 = por %p202, %p203
      %p206 = scmp.ne.s32.totalorder %s189, %s205
      %p207 = scmp.eq.s32.totalorder %s24, 0
      %p208 = por %p206, %p207
      %s209 = ssub.s32 %s18, %s25
      %p210 = scmp.eq.s32.totalorder %s209, 0
      %s212 = sadd.s32 %s211, 1
      %s213 = scalar_select %p210, %s211, %s212
      %p216 = pneg %p210
      %p217 = scmp.eq.s32.totalorder %s18, 1
      %p218 = por %p216, %p217
      %p219 = scmp.ne.s32.totalorder %s211, %s214
      %p220 = scmp.eq.s32.totalorder %s18, 0
      %p221 = por %p219, %p220
      %p222 = scmp.ne.s32.totalorder %s211, %s214
      %p223 = scmp.eq.s32.totalorder %s23, 1
      %p224 = por %p222, %p223
      %p225 = scmp.ne.s32.totalorder %s214, %s215
      %p226 = scmp.eq.s32.totalorder %s23, 0
      %p227 = por %p225, %p226
      %p228 = scmp.ne.s32.totalorder %s214, %s215
      %p229 = scmp.eq.s32.totalorder %s24, 1
      %p230 = por %p228, %p229
      %p232 = scmp.ne.s32.totalorder %s215, %s231
      %p233 = scmp.eq.s32.totalorder %s24, 0
      %p234 = por %p232, %p233
      %p235 = scmp.le.s32.totalorder 1, %s18
      %p236 = scmp.lt.s32.totalorder %s18, 3
      %p237 = pnand %p235, %p236
      %p238 = pneg %p237
      // Predicated region
      $region9: #{resnet1d_forward.5} parent=5 // pred_check
        _
      $region10: #{resnet1d_forward.5} parent=5 // pred_check_branch
        %240 = sbr.rel (%p237) target = $region12
      $region11: #{resnet1d_forward.5} parent=5 // pred_region
        %s241 = ssub.s32 %s18, 1
        // Predicated region
        $region13: #{resnet1d_forward.5} parent=11 // pred_check
          %p242 = pneg %p91
        $region14: #{resnet1d_forward.5} parent=11 // pred_check_branch
          %244 = sbr.rel (%p242) target = $region16
        $region15: #{resnet1d_forward.5} parent=11 // pred_region
          %246 = vsyncadd [#allocation3], 0
          %s248 = sshll.u32 %s2, 4
          %s249 = int_to_ptr.hbm [resolvable:$true] %s248
          %s250 = sshll.u32 [#allocation2], 4
          %s251 = int_to_ptr.vmem [resolvable:$true] %s250
          %253 = dma.hbm_to_vmem [thread:$0]  %s249, 64, %s251, [#allocation3]
        $region16: #{resnet1d_forward.5} parent=11 // pred_fallthru
          _
        // Predicated region
        $region17: #{resnet1d_forward.5} parent=11 // pred_check
          %p254 = pneg %p112
        $region18: #{resnet1d_forward.5} parent=11 // pred_check_branch
          %256 = sbr.rel (%p254) target = $region20
        $region19: #{resnet1d_forward.5} parent=11 // pred_region
          %258 = vsyncadd [#allocation5], 0
          %s260 = sshll.u32 %s3, 4
          %s261 = int_to_ptr.hbm [resolvable:$true] %s260
          %s262 = sshll.u32 [#allocation4], 4
          %s263 = int_to_ptr.vmem [resolvable:$true] %s262
          %265 = dma.hbm_to_vmem [thread:$0]  %s261, 128, %s263, [#allocation5]
        $region20: #{resnet1d_forward.5} parent=11 // pred_fallthru
          _
        // Predicated region
        $region21: #{resnet1d_forward.5} parent=11 // pred_check
          %p266 = pneg %p133
        $region22: #{resnet1d_forward.5} parent=11 // pred_check_branch
          %268 = sbr.rel (%p266) target = $region24
        $region23: #{resnet1d_forward.5} parent=11 // pred_region
          %270 = vsyncadd [#allocation5], 0
          %s272 = sshll.u32 %s4, 4
          %s273 = int_to_ptr.hbm [resolvable:$true] %s272
          %s274 = sshll.u32 [#allocation6], 4
          %s275 = int_to_ptr.vmem [resolvable:$true] %s274
          %277 = dma.hbm_to_vmem [thread:$0]  %s273, 64, %s275, [#allocation5]
        $region24: #{resnet1d_forward.5} parent=11 // pred_fallthru
          _
        // Predicated region
        $region25: #{resnet1d_forward.5} parent=11 // pred_check
          %p278 = pneg %p154
        $region26: #{resnet1d_forward.5} parent=11 // pred_check_branch
          %280 = sbr.rel (%p278) target = $region28
        $region27: #{resnet1d_forward.5} parent=11 // pred_region
          %282 = vsyncadd [#allocation8], 0
          %s284 = sshll.u32 %s5, 4
          %s285 = int_to_ptr.hbm [resolvable:$true] %s284
          %s286 = sshll.u32 [#allocation7], 4
          %s287 = int_to_ptr.vmem [resolvable:$true] %s286
          %289 = dma.hbm_to_vmem [thread:$0]  %s285, 128, %s287, [#allocation8]
        $region28: #{resnet1d_forward.5} parent=11 // pred_fallthru
          _
        // Predicated region
        $region29: #{resnet1d_forward.5} parent=11 // pred_check
          %p290 = pneg %p175
        $region30: #{resnet1d_forward.5} parent=11 // pred_check_branch
          %292 = sbr.rel (%p290) target = $region32
        $region31: #{resnet1d_forward.5} parent=11 // pred_region
          %294 = vsyncadd [#allocation8], 0
          %s296 = sshll.u32 %s6, 4
          %s297 = int_to_ptr.hbm [resolvable:$true] %s296
          %s298 = sshll.u32 [#allocation9], 4
          %s299 = int_to_ptr.vmem [resolvable:$true] %s298
          %301 = dma.hbm_to_vmem [thread:$0]  %s297, 128, %s299, [#allocation8]
        $region32: #{resnet1d_forward.5} parent=11 // pred_fallthru
          _
      $region12: #{resnet1d_forward.5} parent=5 // pred_fallthru
        _
      %p302 = scmp.lt.s32.totalorder %s18, 2
      // Predicated region
      $region33: #{resnet1d_forward.5} parent=5 // pred_check
        %p303 = pneg %p302
      $region34: #{resnet1d_forward.5} parent=5 // pred_check_branch
        %305 = sbr.rel (%p303) target = $region36
      $region35: #{resnet1d_forward.5} parent=5 // pred_region
        // Predicated region
        $region37: #{resnet1d_forward.5} parent=35 // pred_check
          %p306 = pneg %p38
        $region38: #{resnet1d_forward.5} parent=35 // pred_check_branch
          %308 = sbr.rel (%p306) target = $region40
        $region39: #{resnet1d_forward.5} parent=35 // pred_region
          %p309 = scmp.lt.s32.totalorder %s18, 1
          %s310 = scalar_select %p309, %s18, 1
          %s311 = smul.addr %s310, 4
          %s312 = scalar_lea.vmem %s0, %s311
        $region40: #{resnet1d_forward.5} parent=35 // pred_fallthru
          _
        // Predicated region
        $region41: #{resnet1d_forward.5} parent=35 // pred_check
          %p313 = pneg %p64
        $region42: #{resnet1d_forward.5} parent=35 // pred_check_branch
          %315 = sbr.rel (%p313) target = $region44
        $region43: #{resnet1d_forward.5} parent=35 // pred_region
          %p316 = scmp.lt.s32.totalorder %s18, 1
          %s317 = scalar_select %p316, %s18, 1
          %s318 = smul.addr %s317, 4
          %s319 = scalar_lea.vmem %s1, %s318
        $region44: #{resnet1d_forward.5} parent=35 // pred_fallthru
          _
      $region36: #{resnet1d_forward.5} parent=5 // pred_fallthru
        _
      %p320 = scmp.le.s32.totalorder 1, %s18
      %p321 = scmp.lt.s32.totalorder %s18, 3
      %p322 = pnand %p320, %p321
      %p323 = pneg %p322
      // Predicated region
      $region45: #{resnet1d_forward.5} parent=5 // pred_check
        _
      $region46: #{resnet1d_forward.5} parent=5 // pred_check_branch
        %325 = sbr.rel (%p322) target = $region48
      $region47: #{resnet1d_forward.5} parent=5 // pred_region
        %s326 = ssub.s32 %s18, 1
        // Predicated region
        $region49: #{resnet1d_forward.5} parent=47 // pred_check
          %p327 = pneg %p91
        $region50: #{resnet1d_forward.5} parent=47 // pred_check_branch
          %329 = sbr.rel (%p327) target = $region52
        $region51: #{resnet1d_forward.5} parent=47 // pred_region
          %331 = dma.done [#allocation3], 64
        $region52: #{resnet1d_forward.5} parent=47 // pred_fallthru
          _
        // Predicated region
        $region53: #{resnet1d_forward.5} parent=47 // pred_check
          %p332 = pneg %p112
        $region54: #{resnet1d_forward.5} parent=47 // pred_check_branch
          %334 = sbr.rel (%p332) target = $region56
        $region55: #{resnet1d_forward.5} parent=47 // pred_region
          %336 = dma.done [#allocation5], 128
        $region56: #{resnet1d_forward.5} parent=47 // pred_fallthru
          _
        // Predicated region
        $region57: #{resnet1d_forward.5} parent=47 // pred_check
          %p337 = pneg %p133
        $region58: #{resnet1d_forward.5} parent=47 // pred_check_branch
          %339 = sbr.rel (%p337) target = $region60
        $region59: #{resnet1d_forward.5} parent=47 // pred_region
          %341 = dma.done [#allocation5], 64
        $region60: #{resnet1d_forward.5} parent=47 // pred_fallthru
          _
        // Predicated region
        $region61: #{resnet1d_forward.5} parent=47 // pred_check
          %p342 = pneg %p154
        $region62: #{resnet1d_forward.5} parent=47 // pred_check_branch
          %344 = sbr.rel (%p342) target = $region64
        $region63: #{resnet1d_forward.5} parent=47 // pred_region
          %346 = dma.done [#allocation8], 128
        $region64: #{resnet1d_forward.5} parent=47 // pred_fallthru
          _
        // Predicated region
        $region65: #{resnet1d_forward.5} parent=47 // pred_check
          %p347 = pneg %p175
        $region66: #{resnet1d_forward.5} parent=47 // pred_check_branch
          %349 = sbr.rel (%p347) target = $region68
        $region67: #{resnet1d_forward.5} parent=47 // pred_region
          %351 = dma.done [#allocation8], 128
        $region68: #{resnet1d_forward.5} parent=47 // pred_fallthru
          _
        %p352 = scmp.lt.s32.totalorder %s23, 1
        %s353 = scalar_select %p352, %s23, 1
        %s354 = smul.addr %s353, 4
        %s355 = scalar_lea.vmem %s0, %s354
        %p356 = pneg %p44
        %p357 = pneg %p41
        %p358 = scmp.lt.s32.totalorder %s23, 1
        %s359 = scalar_select %p358, %s23, 1
        %s360 = smul.addr %s359, 4
        %s361 = scalar_lea.vmem %s1, %s360
        %p362 = pneg %p70
        %p363 = pneg %p67
        %p364 = pneg %p91
        %p365 = pneg %p88
        %p366 = pneg %p112
        %p367 = pneg %p109
        %p368 = pneg %p133
        %p369 = pneg %p130
        %p370 = pneg %p154
        %p371 = pneg %p151
        %p372 = pneg %p175
        %p373 = pneg %p172
        %p374 = pneg %p201
        %p375 = pneg %p198
        %p376 = scmp.lt.s32.totalorder %s23, 1
        %s377 = scalar_select %p376, %s23, 1
        %s378 = smul.addr %s377, 4
        %s379 = scalar_lea.vmem %s7, %s378
        %p380 = pneg %p227
        %p381 = pneg %p224
        %p382 = scmp.lt.s32.totalorder %s23, 1
        %s383 = scalar_select %p382, %s23, 1
        %s384 = smul.addr %s383, 4
        %s385 = scalar_lea.vmem %s8, %s384
        %p386 = scmp.lt.s32.totalorder %s23, 1
        %s387 = scalar_select %p386, %s23, 1
        %s388 = smul.addr %s387, 4
        %s389 = scalar_lea.vmem %s0, %s388
        %p390 = scmp.lt.s32.totalorder %s23, 1
        %s391 = scalar_select %p390, %s23, 1
        %s392 = smul.addr %s391, 4
        %s393 = scalar_lea.vmem %s1, %s392
        %p394 = scmp.lt.s32.totalorder %s23, 1
        %s395 = scalar_select %p394, %s23, 1
        %s396 = smul.addr %s395, 4
        %s397 = scalar_lea.vmem %s7, %s396
        %p398 = scmp.lt.s32.totalorder %s23, 1
        %s399 = scalar_select %p398, %s23, 1
        %s400 = smul.addr %s399, 4
        %s401 = scalar_lea.vmem %s8, %s400
        %v403 = vld [vmem:[%s389] sm:$0xf]
        %v404 = vld [vmem:[#allocation2] sm:$0xf]
        %v406 = vunpack.c.l.b16 %v403
        %v407 = vpack.c.b16 %v406, %v406
        %408 = vrot.lane.b32.xlu0 %v407, 127
        %v409 = vpop.permute.xlu0 %408
        %410 = vrot.lane.b32.xlu0 %v407, 126
        %v411 = vpop.permute.xlu0 %410
        %412 = vrot.lane.b32.xlu0 %v407, 125
        %v413 = vpop.permute.xlu0 %412
        %414 = vrot.lane.b32.xlu0 %v407, 124
        %v415 = vpop.permute.xlu0 %414
        %vm416 = vcmask 1043456
        %v419 = vsel %vm416, %v403, %v409
        %v423 = vsel %vm416, %v411, %v413
        %v425 = vld [vmem:[#allocation4] sm:$0xff]
        %427 = vset.pattern.permute.xlu0 0
        %428 = vperm.xlu0 %427, %v425
        %v429 = vpop.permute.xlu0 %428
        %vm431 = vcmask 326656
        %v433 = vsel %vm431, %v404, 0
        %v436 = vsel %vm416, %v415, 0
        %438 = vmatpush.bf16.msra.mxu0 0
        %439 = vmatpush.bf16.msra.mxu0 0
        %440 = vmatpush.bf16.msra.mxu0 0
        %441 = vmatpush.bf16.msra.mxu0 0
        %442 = vmatpush.bf16.msra.mxu0 0
        %443 = vmatpush.bf16.msra.mxu0 %v436
        %444 = vmatpush.bf16.msra.mxu0 %v423
        %445 = vmatpush.bf16.msra.mxu0 %v419
        %446 = vmatmul.bf16.gmra.mxu0 %v433
        %v447 = vpop.f32.mrf.mxu0
        %v448 = vadd.f32 %v429, %v447
        %v449 = vpop.f32.mrf.mxu0
        %450 = vdwg.mxu0
        %v451 = vmax.f32 %v448, 0.0
        %v452 = vpack.c.bf16 %v451, %v451
        %v454 = vunpack.c.l.b16 %v452
        %v455 = vpack.c.b16 %v454, %v454
        %456 = vrot.lane.b32.xlu0 %v455, 2
        %v457 = vpop.permute.xlu0 %456
        %vm458 = vcmask 15360
        %v461 = vsel %vm458, 0, %v457
        %vm462 = vcmask 277504
        %v463 = vsel %vm462, %v461, 0
        %v464 = vld [vmem:[#allocation6] sm:$0xf]
        %v466 = vrot.slane %v463, 4
        %467 = vrot.lane.b32.xlu0 %v466, 127
        %v468 = vpop.permute.xlu0 %467
        %469 = vrot.lane.b32.xlu0 %v463, 126
        %v470 = vpop.permute.xlu0 %469
        %471 = vrot.lane.b32.xlu0 %v466, 125
        %v472 = vpop.permute.xlu0 %471
        %473 = vrot.lane.b32.xlu0 %v463, 124
        %v474 = vpop.permute.xlu0 %473
        %v476 = vsel %vm416, %v463, %v468
        %v480 = vsel %vm416, %v470, %v472
        %v482 = vld [vmem:[%s393] sm:$0xf]
        %v483 = vunpack.c.l.bf16 %v482
        %485 = vrot.lane.b32.xlu0 %v483, 126
        %v486 = vpop.permute.xlu0 %485
        %v489 = vsel %vm431, %v464, 0
        %v492 = vsel %vm416, %v474, 0
        %494 = vmatpush.bf16.msra.mxu0 0
        %495 = vmatpush.bf16.msra.mxu0 0
        %496 = vmatpush.bf16.msra.mxu0 0
        %497 = vmatpush.bf16.msra.mxu0 0
        %498 = vmatpush.bf16.msra.mxu0 0
        %499 = vmatpush.bf16.msra.mxu0 %v492
        %500 = vmatpush.bf16.msra.mxu0 %v480
        %501 = vmatpush.bf16.msra.mxu0 %v476
        %502 = vmatmul.bf16.gmra.mxu0 %v489
        %v503 = vpop.f32.mrf.mxu0
        %v504 = vadd.f32 %v486, %v503
        %v505 = vpop.f32.mrf.mxu0
        %506 = vdwg.mxu0
        %v507 = vpack.c.bf16 %v504, %v504
        %vm508 = vcmask 257024
        %509 = vst.msk [vmem:[%s397] sm:$0xf] %vm508, %v507
        %v510 = vld [vmem:[#allocation7] sm:$0xff]
        %512 = vset.pattern.permute.xlu0 0
        %513 = vperm.xlu0 %512, %v510
        %v514 = vpop.permute.xlu0 %513
        %v516 = vmul.f32 %v504, %v514
        %v517 = vld [vmem:[#allocation9] sm:$0xff]
        %519 = vset.pattern.permute.xlu0 0
        %520 = vperm.xlu0 %519, %v517
        %v521 = vpop.permute.xlu0 %520
        %v523 = vadd.f32 %v516, %v521
        %v524 = vmax.f32 %v523, 0.0
        %v525 = vpack.c.bf16 %v524, %v524
        %v527 = vunpack.c.l.b16 %v525
        %v528 = vpack.c.b16 %v527, %v527
        %529 = vrot.lane.b32.xlu0 %v528, 2
        %v530 = vpop.permute.xlu0 %529
        %v532 = vsel %vm458, 0, %v530
        %v533 = vsel %vm462, %v532, 0
        %vm535 = vcmask 289792
        %536 = vst.msk [vmem:[%s401] sm:$0xf] %vm535, %v533
        %p537 = scmp.lt.s32.totalorder %s23, 1
        %s538 = scalar_select %p537, %s23, 1
        %s539 = smul.addr %s538, 4
        %s540 = scalar_lea.vmem %s7, %s539
        %p541 = scmp.lt.s32.totalorder %s23, 1
        %s542 = scalar_select %p541, %s23, 1
        %s543 = smul.addr %s542, 4
        %s544 = scalar_lea.vmem %s8, %s543
        // Predicated region
        $region69: #{resnet1d_forward.5} parent=47 // pred_check
          %p545 = pneg %p198
        $region70: #{resnet1d_forward.5} parent=47 // pred_check_branch
          %547 = sbr.rel (%p545) target = $region72
        $region71: #{resnet1d_forward.5} parent=47 // pred_region
          _
        $region72: #{resnet1d_forward.5} parent=47 // pred_fallthru
          _
        // Predicated region
        $region73: #{resnet1d_forward.5} parent=47 // pred_check
          %p548 = pneg %p224
        $region74: #{resnet1d_forward.5} parent=47 // pred_check_branch
          %550 = sbr.rel (%p548) target = $region76
        $region75: #{resnet1d_forward.5} parent=47 // pred_region
          _
        $region76: #{resnet1d_forward.5} parent=47 // pred_fallthru
          _
      $region48: #{resnet1d_forward.5} parent=5 // pred_fallthru
        _
      %p551 = scmp.le.s32.totalorder 2, %s18
      // Predicated region
      $region77: #{resnet1d_forward.5} parent=5 // pred_check
        %p552 = pneg %p551
      $region78: #{resnet1d_forward.5} parent=5 // pred_check_branch
        %554 = sbr.rel (%p552) target = $region80
      $region79: #{resnet1d_forward.5} parent=5 // pred_region
        %s555 = ssub.s32 %s18, 2
        // Predicated region
        $region81: #{resnet1d_forward.5} parent=79 // pred_check
          %p556 = pneg %p204
        $region82: #{resnet1d_forward.5} parent=79 // pred_check_branch
          %558 = sbr.rel (%p556) target = $region84
        $region83: #{resnet1d_forward.5} parent=79 // pred_region
          %p559 = scmp.lt.s32.totalorder %s24, 1
          %s560 = scalar_select %p559, %s24, 1
          %s561 = smul.addr %s560, 4
          %s562 = scalar_lea.vmem %s7, %s561
        $region84: #{resnet1d_forward.5} parent=79 // pred_fallthru
          _
        // Predicated region
        $region85: #{resnet1d_forward.5} parent=79 // pred_check
          %p563 = pneg %p230
        $region86: #{resnet1d_forward.5} parent=79 // pred_check_branch
          %565 = sbr.rel (%p563) target = $region88
        $region87: #{resnet1d_forward.5} parent=79 // pred_region
          %p566 = scmp.lt.s32.totalorder %s24, 1
          %s567 = scalar_select %p566, %s24, 1
          %s568 = smul.addr %s567, 4
          %s569 = scalar_lea.vmem %s8, %s568
        $region88: #{resnet1d_forward.5} parent=79 // pred_fallthru
          _
      $region80: #{resnet1d_forward.5} parent=5 // pred_fallthru
        _
    $region6: #{resnet1d_forward.5} parent=1 // loop_footer
      %s22 = sadd.s32 1, %s18
    $region7: #{resnet1d_forward.5} parent=1 // loop_footer_branch
      %17 = sbr.rel target = $region3
    $region8: #{resnet1d_forward.5} parent=1 // loop_exit
      _
    %570 = vsyncpa [#allocation3], 1
    %s571 = scalar_lea.sflag [#allocation3], 1
    %572 = vsyncpa %s571, 1
    %573 = vsyncpa [#allocation5], 1
    %574 = vsyncpa [#allocation8], 1

// kernel: resnet1d_forward.4
$region0: #{resnet1d_forward.4}
  #allocation0 [shape = 'u32[]', space=smem, size = 0x4, offset = 0x4, fixed_abs, tag = 'smem constant byte address 0x4 - core index']
  #allocation1 [shape = 'u32[72,128]{1,0:T(1,128)}', space=vmem, size = 0x9000, scoped, tag = 'internal scratch']
  %s0 = inlined_call_operand.vmem [shape: bf16[2,2,4,34], index: 0, kind: input, shape index: {}]
  %s1 = inlined_call_operand.hbm [shape: bf16[8,20], index: 1, kind: input, shape index: {}]
  %s2 = inlined_call_operand.vmem [shape: f32[8,1], index: 2, kind: input, shape index: {}]
  %s3 = inlined_call_operand.vmem [shape: bf16[2,8,36], index: 3, kind: output, shape index: {}]
  %s4 = sld [smem:[#allocation0]]
  $region49: #{resnet1d_forward.4} parent=0
    _
  %s6 = ssub.s32 1, %s4
  %s7 = scalar_select 0, %s6, %s4
  $region1: #{resnet1d_forward.4} parent=0
    #allocation2 [shape = 'u8[2048]{0}', space=vmem, size = 0x800, scoped, tag = 'input window, operand 1, single buffered']
    #allocation3 [shape = 's32[2]{0}', space=sflag, size = 0x8, scoped, tag = 'scoped memory for resnet1d_forward.4']
    %8 = vsyncpa [#allocation3], 0
    loop: start=0, step=1, limit=4
    $region2: #{resnet1d_forward.4} parent=1 // loop_pre_header
      _
    $region3: #{resnet1d_forward.4} parent=1 // loop_header
      %s10 = sphi 0, %s14
      %p11 = scmp.ge.s32.totalorder %s10, 4
      %s17 = sphi 0, %s29
      %s18 = sphi 0, %s25
      %s19 = sphi 0, %s17
      %s20 = sphi 0, %s18
      %s21 = sphi 0, %s19
      %s22 = sphi 0, %s20
      %s32 = sphi 0, %s34
      %s35 = sphi 0, %s32
      %s36 = sphi 0, %s35
      %s52 = sphi 0, %s36
      %s56 = sphi 0, %s56
      %s58 = sphi 0, %s56
      %s59 = sphi 0, %s58
      %s73 = sphi 0, %s59
      %s77 = sphi 0, %s77
      %s79 = sphi 0, %s77
      %s80 = sphi 0, %s79
      %s94 = sphi 0, %s80
      %s100 = sphi 0, %s102
      %s103 = sphi 0, %s100
      %s104 = sphi 0, %s103
      %s120 = sphi 0, %s104
    $region4: #{resnet1d_forward.4} parent=1 // loop_header_branch
      %13 = sbr.rel (%p11) target = $region8
    $region5: #{resnet1d_forward.4} parent=1 // loop_body
      %s15 = ssub.s32 %s10, 1
      %s16 = ssub.s32 %s10, 2
      %s23 = sadd.s32 1, %s18
      %p24 = scmp.ge.s32.totalorder %s23, 1
      %s25 = scalar_select %p24, 0, %s23
      %s26 = sadd.s32 1, %s17
      %s27 = scalar_select %p24, %s26, %s17
      %p28 = scmp.ge.s32.totalorder %s27, 2
      %s29 = scalar_select %p28, 0, %s27
      %s30 = ssub.s32 %s17, %s29
      %p31 = scmp.eq.s32.totalorder %s30, 0
      %s33 = sadd.s32 %s32, 1
      %s34 = scalar_select %p31, %s32, %s33
      %p37 = pneg %p31
      %p38 = scmp.eq.s32.totalorder %s10, 1
      %p39 = por %p37, %p38
      %p40 = scmp.ne.s32.totalorder %s32, %s35
      %p41 = scmp.eq.s32.totalorder %s10, 0
      %p42 = por %p40, %p41
      %p43 = scmp.ne.s32.totalorder %s32, %s35
      %p44 = scmp.eq.s32.totalorder %s15, 1
      %p45 = por %p43, %p44
      %p46 = scmp.ne.s32.totalorder %s35, %s36
      %p47 = scmp.eq.s32.totalorder %s15, 0
      %p48 = por %p46, %p47
      %p49 = scmp.ne.s32.totalorder %s35, %s36
      %p50 = scmp.eq.s32.totalorder %s16, 1
      %p51 = por %p49, %p50
      %p53 = scmp.ne.s32.totalorder %s36, %s52
      %p54 = scmp.eq.s32.totalorder %s16, 0
      %p55 = por %p53, %p54
      %s57 = sadd.s32 %s56, 1
      %p60 = scmp.eq.s32.totalorder %s10, 1
      %p61 = scmp.ne.s32.totalorder %s56, %s58
      %p62 = scmp.eq.s32.totalorder %s10, 0
      %p63 = por %p61, %p62
      %p64 = scmp.ne.s32.totalorder %s56, %s58
      %p65 = scmp.eq.s32.totalorder %s15, 1
      %p66 = por %p64, %p65
      %p67 = scmp.ne.s32.totalorder %s58, %s59
      %p68 = scmp.eq.s32.totalorder %s15, 0
      %p69 = por %p67, %p68
      %p70 = scmp.ne.s32.totalorder %s58, %s59
      %p71 = scmp.eq.s32.totalorder %s16, 1
      %p72 = por %p70, %p71
      %p74 = scmp.ne.s32.totalorder %s59, %s73
      %p75 = scmp.eq.s32.totalorder %s16, 0
      %p76 = por %p74, %p75
      %s78 = sadd.s32 %s77, 1
      %p81 = scmp.eq.s32.totalorder %s10, 1
      %p82 = scmp.ne.s32.totalorder %s77, %s79
      %p83 = scmp.eq.s32.totalorder %s10, 0
      %p84 = por %p82, %p83
      %p85 = scmp.ne.s32.totalorder %s77, %s79
      %p86 = scmp.eq.s32.totalorder %s15, 1
      %p87 = por %p85, %p86
      %p88 = scmp.ne.s32.totalorder %s79, %s80
      %p89 = scmp.eq.s32.totalorder %s15, 0
      %p90 = por %p88, %p89
      %p91 = scmp.ne.s32.totalorder %s79, %s80
      %p92 = scmp.eq.s32.totalorder %s16, 1
      %p93 = por %p91, %p92
      %p95 = scmp.ne.s32.totalorder %s80, %s94
      %p96 = scmp.eq.s32.totalorder %s16, 0
      %p97 = por %p95, %p96
      %s98 = ssub.s32 %s17, %s29
      %p99 = scmp.eq.s32.totalorder %s98, 0
      %s101 = sadd.s32 %s100, 1
      %s102 = scalar_select %p99, %s100, %s101
      %p105 = pneg %p99
      %p106 = scmp.eq.s32.totalorder %s10, 1
      %p107 = por %p105, %p106
      %p108 = scmp.ne.s32.totalorder %s100, %s103
      %p109 = scmp.eq.s32.totalorder %s10, 0
      %p110 = por %p108, %p109
      %p111 = scmp.ne.s32.totalorder %s100, %s103
      %p112 = scmp.eq.s32.totalorder %s15, 1
      %p113 = por %p111, %p112
      %p114 = scmp.ne.s32.totalorder %s103, %s104
      %p115 = scmp.eq.s32.totalorder %s15, 0
      %p116 = por %p114, %p115
      %p117 = scmp.ne.s32.totalorder %s103, %s104
      %p118 = scmp.eq.s32.totalorder %s16, 1
      %p119 = por %p117, %p118
      %p121 = scmp.ne.s32.totalorder %s104, %s120
      %p122 = scmp.eq.s32.totalorder %s16, 0
      %p123 = por %p121, %p122
      %p124 = scmp.le.s32.totalorder 1, %s10
      %p125 = scmp.lt.s32.totalorder %s10, 3
      %p126 = pnand %p124, %p125
      %p127 = pneg %p126
      // Predicated region
      $region9: #{resnet1d_forward.4} parent=5 // pred_check
        _
      $region10: #{resnet1d_forward.4} parent=5 // pred_check_branch
        %129 = sbr.rel (%p126) target = $region12
      $region11: #{resnet1d_forward.4} parent=5 // pred_region
        %s130 = ssub.s32 %s10, 1
        // Predicated region
        $region13: #{resnet1d_forward.4} parent=11 // pred_check
          %p131 = pneg %p69
        $region14: #{resnet1d_forward.4} parent=11 // pred_check_branch
          %133 = sbr.rel (%p131) target = $region16
        $region15: #{resnet1d_forward.4} parent=11 // pred_region
          %135 = vsyncadd [#allocation3], 0
          %s137 = sshll.u32 %s1, 4
          %s138 = int_to_ptr.hbm [resolvable:$true] %s137
          %s139 = sshll.u32 [#allocation2], 4
          %s140 = int_to_ptr.vmem [resolvable:$true] %s139
          %142 = dma.hbm_to_vmem [thread:$0]  %s138, 64, %s140, [#allocation3]
        $region16: #{resnet1d_forward.4} parent=11 // pred_fallthru
          _
        // Predicated region
        $region17: #{resnet1d_forward.4} parent=11 // pred_check
          %p143 = pneg %p90
        $region18: #{resnet1d_forward.4} parent=11 // pred_check_branch
          %145 = sbr.rel (%p143) target = $region20
        $region19: #{resnet1d_forward.4} parent=11 // pred_region
          _
        $region20: #{resnet1d_forward.4} parent=11 // pred_fallthru
          _
      $region12: #{resnet1d_forward.4} parent=5 // pred_fallthru
        _
      %p146 = scmp.lt.s32.totalorder %s10, 2
      // Predicated region
      $region21: #{resnet1d_forward.4} parent=5 // pred_check
        %p147 = pneg %p146
      $region22: #{resnet1d_forward.4} parent=5 // pred_check_branch
        %149 = sbr.rel (%p147) target = $region24
      $region23: #{resnet1d_forward.4} parent=5 // pred_region
        // Predicated region
        $region25: #{resnet1d_forward.4} parent=23 // pred_check
          %p150 = pneg %p42
        $region26: #{resnet1d_forward.4} parent=23 // pred_check_branch
          %152 = sbr.rel (%p150) target = $region28
        $region27: #{resnet1d_forward.4} parent=23 // pred_region
          %p153 = scmp.lt.s32.totalorder %s17, 1
          %s154 = scalar_select %p153, %s17, 1
          %s155 = smul.addr %s154, 2
          %s156 = smul.addr %s155, 2
          %s157 = scalar_lea.vmem %s0, %s156
        $region28: #{resnet1d_forward.4} parent=23 // pred_fallthru
          _
      $region24: #{resnet1d_forward.4} parent=5 // pred_fallthru
        _
      %p158 = scmp.le.s32.totalorder 1, %s10
      %p159 = scmp.lt.s32.totalorder %s10, 3
      %p160 = pnand %p158, %p159
      %p161 = pneg %p160
      // Predicated region
      $region29: #{resnet1d_forward.4} parent=5 // pred_check
        _
      $region30: #{resnet1d_forward.4} parent=5 // pred_check_branch
        %163 = sbr.rel (%p160) target = $region32
      $region31: #{resnet1d_forward.4} parent=5 // pred_region
        %s164 = ssub.s32 %s10, 1
        // Predicated region
        $region33: #{resnet1d_forward.4} parent=31 // pred_check
          %p165 = pneg %p69
        $region34: #{resnet1d_forward.4} parent=31 // pred_check_branch
          %167 = sbr.rel (%p165) target = $region36
        $region35: #{resnet1d_forward.4} parent=31 // pred_region
          %169 = dma.done [#allocation3], 64
        $region36: #{resnet1d_forward.4} parent=31 // pred_fallthru
          _
        %p170 = scmp.lt.s32.totalorder %s19, 1
        %s171 = scalar_select %p170, %s19, 1
        %s172 = smul.addr %s171, 2
        %s173 = smul.addr %s172, 2
        %s174 = scalar_lea.vmem %s0, %s173
        %p175 = pneg %p48
        %p176 = pneg %p45
        %p177 = pneg %p69
        %p178 = pneg %p66
        %p179 = pneg %p90
        %p180 = pneg %p87
        %p181 = pneg %p116
        %p182 = pneg %p113
        %p183 = scmp.lt.s32.totalorder %s19, 1
        %s184 = scalar_select %p183, %s19, 1
        %s185 = smul.addr %s184, 4
        %s186 = scalar_lea.vmem %s3, %s185
        %p187 = scmp.lt.s32.totalorder %s19, 1
        %s188 = scalar_select %p187, %s19, 1
        %s189 = smul.addr %s188, 2
        %s190 = smul.addr %s189, 2
        %s191 = scalar_lea.vmem %s0, %s190
        %p192 = scmp.lt.s32.totalorder %s19, 1
        %s193 = scalar_select %p192, %s19, 1
        %s194 = smul.addr %s193, 4
        %s195 = scalar_lea.vmem %s3, %s194
        %v197 = vld [vmem:[%s191] sm:$0x3]
        %s198 = scalar_lea.vmem %s191, 2
        %v199 = vld [vmem:[%s198] sm:$0x3]
        %s201 = scalar_lea.vmem [#allocation1], 1
        %202 = vst [vmem:[%s201] ss:$4 sm:$0xff] %v199
        %v203 = vld.sshfl [vmem:[#allocation1] sm:$0xff pattern:$0x73625140]
        %s205 = scalar_lea.vmem [#allocation1], 2
        %206 = vst [vmem:[%s205] ss:$4 sm:$0xff] %v197
        %v207 = vld.sshfl [vmem:[#allocation1] sm:$0xff pattern:$0x73625140]
        %209 = vrot.lane.b32.xlu0 %v207, 127
        %v210 = vpop.permute.xlu0 %209
        %s211 = scalar_lea.vmem [#allocation1], 3
        %212 = vst [vmem:[%s211] ss:$4 sm:$0xff] %v199
        %v213 = vld.sshfl [vmem:[#allocation1] sm:$0xff pattern:$0x73625140]
        %215 = vrot.lane.b32.xlu0 %v213, 127
        %v216 = vpop.permute.xlu0 %215
        %217 = vst [vmem:[#allocation1] ss:$4 sm:$0xff] %v197
        %v218 = vld.sshfl [vmem:[#allocation1] sm:$0xff pattern:$0x73625140]
        %220 = vrot.lane.b32.xlu0 %v218, 126
        %v221 = vpop.permute.xlu0 %220
        %vm222 = vcmask 1041408
        %v223 = vsel %vm222, %v197, %v203
        %vm224 = vcmask 1043456
        %v226 = vsel %vm224, %v223, %v210
        %vm227 = vcmask 1045504
        %v229 = vsel %vm227, %v226, %v216
        %v231 = vld [vmem:[#allocation2] sm:$0xf]
        %v232 = vld [vmem:[%s2] sm:$0xff]
        %234 = vset.pattern.permute.xlu0 0
        %235 = vperm.xlu0 %234, %v232
        %v236 = vpop.permute.xlu0 %235
        %vm238 = vcmask 162816
        %v240 = vsel %vm238, %v231, 0
        %v243 = vsel %vm222, %v221, 0
        %245 = vmatpush.bf16.msra.mxu0 0
        %246 = vmatpush.bf16.msra.mxu0 0
        %247 = vmatpush.bf16.msra.mxu0 0
        %248 = vmatpush.bf16.msra.mxu0 0
        %249 = vmatpush.bf16.msra.mxu0 0
        %250 = vmatpush.bf16.msra.mxu0 0
        %251 = vmatpush.bf16.msra.mxu0 %v243
        %252 = vmatpush.bf16.msra.mxu0 %v229
        %253 = vmatmul.bf16.gmra.mxu0 %v240
        %v254 = vpop.f32.mrf.mxu0
        %v255 = vadd.f32 %v236, %v254
        %v256 = vpop.f32.mrf.mxu0
        %257 = vdwg.mxu0
        %v258 = vpack.c.bf16 %v255, %v255
        %v260 = vunpack.c.l.b16 %v258
        %v261 = vpack.c.b16 %v260, %v260
        %262 = vrot.lane.b32.xlu0 %v261, 2
        %v263 = vpop.permute.xlu0 %262
        %vm264 = vcmask 15360
        %v267 = vsel %vm264, 0, %v263
        %vm268 = vcmask 277504
        %v269 = vsel %vm268, %v267, 0
        %vm271 = vcmask 289792
        %272 = vst.msk [vmem:[%s195] sm:$0xf] %vm271, %v269
        %p273 = scmp.lt.s32.totalorder %s19, 1
        %s274 = scalar_select %p273, %s19, 1
        %s275 = smul.addr %s274, 4
        %s276 = scalar_lea.vmem %s3, %s275
        // Predicated region
        $region37: #{resnet1d_forward.4} parent=31 // pred_check
          %p277 = pneg %p113
        $region38: #{resnet1d_forward.4} parent=31 // pred_check_branch
          %279 = sbr.rel (%p277) target = $region40
        $region39: #{resnet1d_forward.4} parent=31 // pred_region
          _
        $region40: #{resnet1d_forward.4} parent=31 // pred_fallthru
          _
      $region32: #{resnet1d_forward.4} parent=5 // pred_fallthru
        _
      %p280 = scmp.le.s32.totalorder 2, %s10
      // Predicated region
      $region41: #{resnet1d_forward.4} parent=5 // pred_check
        %p281 = pneg %p280
      $region42: #{resnet1d_forward.4} parent=5 // pred_check_branch
        %283 = sbr.rel (%p281) target = $region44
      $region43: #{resnet1d_forward.4} parent=5 // pred_region
        %s284 = ssub.s32 %s10, 2
        // Predicated region
        $region45: #{resnet1d_forward.4} parent=43 // pred_check
          %p285 = pneg %p119
        $region46: #{resnet1d_forward.4} parent=43 // pred_check_branch
          %287 = sbr.rel (%p285) target = $region48
        $region47: #{resnet1d_forward.4} parent=43 // pred_region
          %p288 = scmp.lt.s32.totalorder %s21, 1
          %s289 = scalar_select %p288, %s21, 1
          %s290 = smul.addr %s289, 4
          %s291 = scalar_lea.vmem %s3, %s290
        $region48: #{resnet1d_forward.4} parent=43 // pred_fallthru
          _
      $region44: #{resnet1d_forward.4} parent=5 // pred_fallthru
        _
    $region6: #{resnet1d_forward.4} parent=1 // loop_footer
      %s14 = sadd.s32 1, %s10
    $region7: #{resnet1d_forward.4} parent=1 // loop_footer_branch
      %9 = sbr.rel target = $region3
    $region8: #{resnet1d_forward.4} parent=1 // loop_exit
      _
    %292 = vsyncpa [#allocation3], 1
    %s293 = scalar_lea.sflag [#allocation3], 1
    %294 = vsyncpa %s293, 1

// kernel: resnet1d_forward.6
$region0: #{resnet1d_forward.6}
  #allocation0 [shape = 'u32[]', space=smem, size = 0x4, offset = 0x4, fixed_abs, tag = 'smem constant byte address 0x4 - core index']
  #allocation1 [shape = 'u32[72,128]{1,0:T(1,128)}', space=vmem, size = 0x9000, scoped, tag = 'internal scratch']
  %s0 = inlined_call_operand.vmem [shape: bf16[2,2,8,18], index: 0, kind: input, shape index: {}]
  %s1 = inlined_call_operand.vmem [shape: bf16[2,2,8,16], index: 1, kind: input, shape index: {}]
  %s2 = inlined_call_operand.vmem [shape: bf16[16,40], index: 2, kind: input, shape index: {}]
  %s3 = inlined_call_operand.hbm [shape: f32[16,1], index: 3, kind: input, shape index: {}]
  %s4 = inlined_call_operand.hbm [shape: bf16[16,80], index: 4, kind: input, shape index: {}]
  %s5 = inlined_call_operand.hbm [shape: bf16[16,8], index: 5, kind: input, shape index: {}]
  %s6 = inlined_call_operand.hbm [shape: f32[16,1], index: 6, kind: input, shape index: {}]
  %s7 = inlined_call_operand.hbm [shape: f32[16,1], index: 7, kind: input, shape index: {}]
  %s8 = inlined_call_operand.hbm [shape: bf16[2,16,16], index: 8, kind: output, shape index: {0}]
  %s9 = inlined_call_operand.vmem [shape: bf16[2,16,16], index: 9, kind: output, shape index: {1}]
  %10 = xla_tuple %s8, %s9
  %s11 = sld [smem:[#allocation0]]
  $region93: #{resnet1d_forward.6} parent=0
    _
  %s13 = ssub.s32 1, %s11
  %s14 = scalar_select 0, %s13, %s11
  $region1: #{resnet1d_forward.6} parent=0
    #allocation2 [shape = 'u8[8192]{0}', space=vmem, size = 0x2000, scoped, tag = 'input window, operand 3, single buffered']
    #allocation3 [shape = 's32[2]{0}', space=sflag, size = 0x8, scoped, tag = 'scoped memory for resnet1d_forward.6']
    #allocation4 [shape = 's32[2]{0}', space=sflag, size = 0x8, scoped, tag = 'scoped memory for resnet1d_forward.6']
    #allocation5 [shape = 'u8[4096]{0}', space=vmem, size = 0x1000, scoped, tag = 'input window, operand 4, single buffered']
    #allocation6 [shape = 's32[1]{0}', space=sflag, size = 0x4, scoped, tag = 'scoped memory for resnet1d_forward.6']
    #allocation7 [shape = 'u8[4096]{0}', space=vmem, size = 0x1000, scoped, tag = 'input window, operand 5, single buffered']
    #allocation8 [shape = 'u8[8192]{0}', space=vmem, size = 0x2000, scoped, tag = 'input window, operand 6, single buffered']
    #allocation9 [shape = 's32[1]{0}', space=sflag, size = 0x4, scoped, tag = 'scoped memory for resnet1d_forward.6']
    #allocation10 [shape = 'u8[8192]{0}', space=vmem, size = 0x2000, scoped, tag = 'input window, operand 7, single buffered']
    #allocation11 [shape = 'u8[8192]{0}', space=vmem, size = 0x2000, scoped, tag = 'output window, operand 0']
    %15 = vsyncpa [#allocation3], 0
    %16 = vsyncpa [#allocation6], 0
    %17 = vsyncpa [#allocation9], 0
    %18 = vsyncpa [#allocation4], 0
    %s19 = scalar_lea.sflag [#allocation4], 1
    %20 = vsyncpa %s19, 0
    loop: start=0, step=1, limit=4
    $region2: #{resnet1d_forward.6} parent=1 // loop_pre_header
      _
    $region3: #{resnet1d_forward.6} parent=1 // loop_header
      %s22 = sphi 0, %s26
      %p23 = scmp.ge.s32.totalorder %s22, 4
      %s32 = sphi 0, %s34
      %s35 = sphi 0, %s32
      %s36 = sphi 0, %s35
      %s52 = sphi 0, %s36
      %s58 = sphi 0, %s60
      %s61 = sphi 0, %s58
      %s62 = sphi 0, %s61
      %s78 = sphi 0, %s62
      %s82 = sphi 0, %s82
      %s84 = sphi 0, %s82
      %s85 = sphi 0, %s84
      %s99 = sphi 0, %s85
      %s103 = sphi 0, %s103
      %s105 = sphi 0, %s103
      %s106 = sphi 0, %s105
      %s120 = sphi 0, %s106
      %s124 = sphi 0, %s124
      %s126 = sphi 0, %s124
      %s127 = sphi 0, %s126
      %s141 = sphi 0, %s127
      %s145 = sphi 0, %s145
      %s147 = sphi 0, %s145
      %s148 = sphi 0, %s147
      %s162 = sphi 0, %s148
      %s166 = sphi 0, %s166
      %s168 = sphi 0, %s166
      %s169 = sphi 0, %s168
      %s183 = sphi 0, %s169
      %s187 = sphi 0, %s187
      %s189 = sphi 0, %s187
      %s190 = sphi 0, %s189
      %s204 = sphi 0, %s190
      %s210 = sphi 0, %s212
      %s213 = sphi 0, %s210
      %s214 = sphi 0, %s213
      %s230 = sphi 0, %s214
      %s236 = sphi 0, %s238
      %s239 = sphi 0, %s236
      %s240 = sphi 0, %s239
      %s256 = sphi 0, %s240
    $region4: #{resnet1d_forward.6} parent=1 // loop_header_branch
      %25 = sbr.rel (%p23) target = $region8
    $region5: #{resnet1d_forward.6} parent=1 // loop_body
      %s27 = ssub.s32 %s22, 1
      %s28 = ssub.s32 %s22, 2
      %s29 = sadd.s32 %s22, 1
      %s30 = ssub.s32 %s22, %s29
      %p31 = scmp.eq.s32.totalorder %s30, 0
      %s33 = sadd.s32 %s32, 1
      %s34 = scalar_select %p31, %s32, %s33
      %p37 = pneg %p31
      %p38 = scmp.eq.s32.totalorder %s22, 1
      %p39 = por %p37, %p38
      %p40 = scmp.ne.s32.totalorder %s32, %s35
      %p41 = scmp.eq.s32.totalorder %s22, 0
      %p42 = por %p40, %p41
      %p43 = scmp.ne.s32.totalorder %s32, %s35
      %p44 = scmp.eq.s32.totalorder %s27, 1
      %p45 = por %p43, %p44
      %p46 = scmp.ne.s32.totalorder %s35, %s36
      %p47 = scmp.eq.s32.totalorder %s27, 0
      %p48 = por %p46, %p47
      %p49 = scmp.ne.s32.totalorder %s35, %s36
      %p50 = scmp.eq.s32.totalorder %s28, 1
      %p51 = por %p49, %p50
      %p53 = scmp.ne.s32.totalorder %s36, %s52
      %p54 = scmp.eq.s32.totalorder %s28, 0
      %p55 = por %p53, %p54
      %s56 = ssub.s32 %s22, %s29
      %p57 = scmp.eq.s32.totalorder %s56, 0
      %s59 = sadd.s32 %s58, 1
      %s60 = scalar_select %p57, %s58, %s59
      %p63 = pneg %p57
      %p64 = scmp.eq.s32.totalorder %s22, 1
      %p65 = por %p63, %p64
      %p66 = scmp.ne.s32.totalorder %s58, %s61
      %p67 = scmp.eq.s32.totalorder %s22, 0
      %p68 = por %p66, %p67
      %p69 = scmp.ne.s32.totalorder %s58, %s61
      %p70 = scmp.eq.s32.totalorder %s27, 1
      %p71 = por %p69, %p70
      %p72 = scmp.ne.s32.totalorder %s61, %s62
      %p73 = scmp.eq.s32.totalorder %s27, 0
      %p74 = por %p72, %p73
      %p75 = scmp.ne.s32.totalorder %s61, %s62
      %p76 = scmp.eq.s32.totalorder %s28, 1
      %p77 = por %p75, %p76
      %p79 = scmp.ne.s32.totalorder %s62, %s78
      %p80 = scmp.eq.s32.totalorder %s28, 0
      %p81 = por %p79, %p80
      %s83 = sadd.s32 %s82, 1
      %p86 = scmp.eq.s32.totalorder %s22, 1
      %p87 = scmp.ne.s32.totalorder %s82, %s84
      %p88 = scmp.eq.s32.totalorder %s22, 0
      %p89 = por %p87, %p88
      %p90 = scmp.ne.s32.totalorder %s82, %s84
      %p91 = scmp.eq.s32.totalorder %s27, 1
      %p92 = por %p90, %p91
      %p93 = scmp.ne.s32.totalorder %s84, %s85
      %p94 = scmp.eq.s32.totalorder %s27, 0
      %p95 = por %p93, %p94
      %p96 = scmp.ne.s32.totalorder %s84, %s85
      %p97 = scmp.eq.s32.totalorder %s28, 1
      %p98 = por %p96, %p97
      %p100 = scmp.ne.s32.totalorder %s85, %s99
      %p101 = scmp.eq.s32.totalorder %s28, 0
      %p102 = por %p100, %p101
      %s104 = sadd.s32 %s103, 1
      %p107 = scmp.eq.s32.totalorder %s22, 1
      %p108 = scmp.ne.s32.totalorder %s103, %s105
      %p109 = scmp.eq.s32.totalorder %s22, 0
      %p110 = por %p108, %p109
      %p111 = scmp.ne.s32.totalorder %s103, %s105
      %p112 = scmp.eq.s32.totalorder %s27, 1
      %p113 = por %p111, %p112
      %p114 = scmp.ne.s32.totalorder %s105, %s106
      %p115 = scmp.eq.s32.totalorder %s27, 0
      %p116 = por %p114, %p115
      %p117 = scmp.ne.s32.totalorder %s105, %s106
      %p118 = scmp.eq.s32.totalorder %s28, 1
      %p119 = por %p117, %p118
      %p121 = scmp.ne.s32.totalorder %s106, %s120
      %p122 = scmp.eq.s32.totalorder %s28, 0
      %p123 = por %p121, %p122
      %s125 = sadd.s32 %s124, 1
      %p128 = scmp.eq.s32.totalorder %s22, 1
      %p129 = scmp.ne.s32.totalorder %s124, %s126
      %p130 = scmp.eq.s32.totalorder %s22, 0
      %p131 = por %p129, %p130
      %p132 = scmp.ne.s32.totalorder %s124, %s126
      %p133 = scmp.eq.s32.totalorder %s27, 1
      %p134 = por %p132, %p133
      %p135 = scmp.ne.s32.totalorder %s126, %s127
      %p136 = scmp.eq.s32.totalorder %s27, 0
      %p137 = por %p135, %p136
      %p138 = scmp.ne.s32.totalorder %s126, %s127
      %p139 = scmp.eq.s32.totalorder %s28, 1
      %p140 = por %p138, %p139
      %p142 = scmp.ne.s32.totalorder %s127, %s141
      %p143 = scmp.eq.s32.totalorder %s28, 0
      %p144 = por %p142, %p143
      %s146 = sadd.s32 %s145, 1
      %p149 = scmp.eq.s32.totalorder %s22, 1
      %p150 = scmp.ne.s32.totalorder %s145, %s147
      %p151 = scmp.eq.s32.totalorder %s22, 0
      %p152 = por %p150, %p151
      %p153 = scmp.ne.s32.totalorder %s145, %s147
      %p154 = scmp.eq.s32.totalorder %s27, 1
      %p155 = por %p153, %p154
      %p156 = scmp.ne.s32.totalorder %s147, %s148
      %p157 = scmp.eq.s32.totalorder %s27, 0
      %p158 = por %p156, %p157
      %p159 = scmp.ne.s32.totalorder %s147, %s148
      %p160 = scmp.eq.s32.totalorder %s28, 1
      %p161 = por %p159, %p160
      %p163 = scmp.ne.s32.totalorder %s148, %s162
      %p164 = scmp.eq.s32.totalorder %s28, 0
      %p165 = por %p163, %p164
      %s167 = sadd.s32 %s166, 1
      %p170 = scmp.eq.s32.totalorder %s22, 1
      %p171 = scmp.ne.s32.totalorder %s166, %s168
      %p172 = scmp.eq.s32.totalorder %s22, 0
      %p173 = por %p171, %p172
      %p174 = scmp.ne.s32.totalorder %s166, %s168
      %p175 = scmp.eq.s32.totalorder %s27, 1
      %p176 = por %p174, %p175
      %p177 = scmp.ne.s32.totalorder %s168, %s169
      %p178 = scmp.eq.s32.totalorder %s27, 0
      %p179 = por %p177, %p178
      %p180 = scmp.ne.s32.totalorder %s168, %s169
      %p181 = scmp.eq.s32.totalorder %s28, 1
      %p182 = por %p180, %p181
      %p184 = scmp.ne.s32.totalorder %s169, %s183
      %p185 = scmp.eq.s32.totalorder %s28, 0
      %p186 = por %p184, %p185
      %s188 = sadd.s32 %s187, 1
      %p191 = scmp.eq.s32.totalorder %s22, 1
      %p192 = scmp.ne.s32.totalorder %s187, %s189
      %p193 = scmp.eq.s32.totalorder %s22, 0
      %p194 = por %p192, %p193
      %p195 = scmp.ne.s32.totalorder %s187, %s189
      %p196 = scmp.eq.s32.totalorder %s27, 1
      %p197 = por %p195, %p196
      %p198 = scmp.ne.s32.totalorder %s189, %s190
      %p199 = scmp.eq.s32.totalorder %s27, 0
      %p200 = por %p198, %p199
      %p201 = scmp.ne.s32.totalorder %s189, %s190
      %p202 = scmp.eq.s32.totalorder %s28, 1
      %p203 = por %p201, %p202
      %p205 = scmp.ne.s32.totalorder %s190, %s204
      %p206 = scmp.eq.s32.totalorder %s28, 0
      %p207 = por %p205, %p206
      %s208 = ssub.s32 %s22, %s29
      %p209 = scmp.eq.s32.totalorder %s208, 0
      %s211 = sadd.s32 %s210, 1
      %s212 = scalar_select %p209, %s210, %s211
      %p215 = pneg %p209
      %p216 = scmp.eq.s32.totalorder %s22, 1
      %p217 = por %p215, %p216
      %p218 = scmp.ne.s32.totalorder %s210, %s213
      %p219 = scmp.eq.s32.totalorder %s22, 0
      %p220 = por %p218, %p219
      %p221 = scmp.ne.s32.totalorder %s210, %s213
      %p222 = scmp.eq.s32.totalorder %s27, 1
      %p223 = por %p221, %p222
      %p224 = scmp.ne.s32.totalorder %s213, %s214
      %p225 = scmp.eq.s32.totalorder %s27, 0
      %p226 = por %p224, %p225
      %p227 = scmp.ne.s32.totalorder %s213, %s214
      %p228 = scmp.eq.s32.totalorder %s28, 1
      %p229 = por %p227, %p228
      %p231 = scmp.ne.s32.totalorder %s214, %s230
      %p232 = scmp.eq.s32.totalorder %s28, 0
      %p233 = por %p231, %p232
      %s234 = ssub.s32 %s22, %s29
      %p235 = scmp.eq.s32.totalorder %s234, 0
      %s237 = sadd.s32 %s236, 1
      %s238 = scalar_select %p235, %s236, %s237
      %p241 = pneg %p235
      %p242 = scmp.eq.s32.totalorder %s22, 1
      %p243 = por %p241, %p242
      %p244 = scmp.ne.s32.totalorder %s236, %s239
      %p245 = scmp.eq.s32.totalorder %s22, 0
      %p246 = por %p244, %p245
      %p247 = scmp.ne.s32.totalorder %s236, %s239
      %p248 = scmp.eq.s32.totalorder %s27, 1
      %p249 = por %p247, %p248
      %p250 = scmp.ne.s32.totalorder %s239, %s240
      %p251 = scmp.eq.s32.totalorder %s27, 0
      %p252 = por %p250, %p251
      %p253 = scmp.ne.s32.totalorder %s239, %s240
      %p254 = scmp.eq.s32.totalorder %s28, 1
      %p255 = por %p253, %p254
      %p257 = scmp.ne.s32.totalorder %s240, %s256
      %p258 = scmp.eq.s32.totalorder %s28, 0
      %p259 = por %p257, %p258
      %p260 = scmp.le.s32.totalorder 1, %s22
      %p261 = scmp.lt.s32.totalorder %s22, 3
      %p262 = pnand %p260, %p261
      %p263 = pneg %p262
      // Predicated region
      $region9: #{resnet1d_forward.6} parent=5 // pred_check
        _
      $region10: #{resnet1d_forward.6} parent=5 // pred_check_branch
        %265 = sbr.rel (%p262) target = $region12
      $region11: #{resnet1d_forward.6} parent=5 // pred_region
        %s266 = ssub.s32 %s22, 1
        // Predicated region
        $region13: #{resnet1d_forward.6} parent=11 // pred_check
          %p267 = pneg %p95
        $region14: #{resnet1d_forward.6} parent=11 // pred_check_branch
          %269 = sbr.rel (%p267) target = $region16
        $region15: #{resnet1d_forward.6} parent=11 // pred_region
          _
        $region16: #{resnet1d_forward.6} parent=11 // pred_fallthru
          _
        // Predicated region
        $region17: #{resnet1d_forward.6} parent=11 // pred_check
          %p270 = pneg %p116
        $region18: #{resnet1d_forward.6} parent=11 // pred_check_branch
          %272 = sbr.rel (%p270) target = $region20
        $region19: #{resnet1d_forward.6} parent=11 // pred_region
          %274 = vsyncadd [#allocation3], 0
          %s275 = sshll.u32 %s3, 4
          %s276 = int_to_ptr.hbm [resolvable:$true] %s275
          %s277 = sshll.u32 [#allocation2], 4
          %s278 = int_to_ptr.vmem [resolvable:$true] %s277
          %283 = dma.hbm_to_vmem [thread:$0]  %s276, 256, %s278, [#allocation3], 128, 128, 8
        $region20: #{resnet1d_forward.6} parent=11 // pred_fallthru
          _
        // Predicated region
        $region21: #{resnet1d_forward.6} parent=11 // pred_check
          %p284 = pneg %p137
        $region22: #{resnet1d_forward.6} parent=11 // pred_check_branch
          %286 = sbr.rel (%p284) target = $region24
        $region23: #{resnet1d_forward.6} parent=11 // pred_region
          %288 = vsyncadd [#allocation6], 0
          %s289 = sshll.u32 %s4, 4
          %s290 = int_to_ptr.hbm [resolvable:$true] %s289
          %s291 = sshll.u32 [#allocation5], 4
          %s292 = int_to_ptr.vmem [resolvable:$true] %s291
          %297 = dma.hbm_to_vmem [thread:$0]  %s290, 128, %s292, [#allocation6], 64, 64, 4
        $region24: #{resnet1d_forward.6} parent=11 // pred_fallthru
          _
        // Predicated region
        $region25: #{resnet1d_forward.6} parent=11 // pred_check
          %p298 = pneg %p158
        $region26: #{resnet1d_forward.6} parent=11 // pred_check_branch
          %300 = sbr.rel (%p298) target = $region28
        $region27: #{resnet1d_forward.6} parent=11 // pred_region
          %302 = vsyncadd [#allocation6], 0
          %s303 = sshll.u32 %s5, 4
          %s304 = int_to_ptr.hbm [resolvable:$true] %s303
          %s305 = sshll.u32 [#allocation7], 4
          %s306 = int_to_ptr.vmem [resolvable:$true] %s305
          %311 = dma.hbm_to_vmem [thread:$0]  %s304, 128, %s306, [#allocation6], 64, 64, 4
        $region28: #{resnet1d_forward.6} parent=11 // pred_fallthru
          _
        // Predicated region
        $region29: #{resnet1d_forward.6} parent=11 // pred_check
          %p312 = pneg %p179
        $region30: #{resnet1d_forward.6} parent=11 // pred_check_branch
          %314 = sbr.rel (%p312) target = $region32
        $region31: #{resnet1d_forward.6} parent=11 // pred_region
          %316 = vsyncadd [#allocation9], 0
          %s317 = sshll.u32 %s6, 4
          %s318 = int_to_ptr.hbm [resolvable:$true] %s317
          %s319 = sshll.u32 [#allocation8], 4
          %s320 = int_to_ptr.vmem [resolvable:$true] %s319
          %325 = dma.hbm_to_vmem [thread:$0]  %s318, 256, %s320, [#allocation9], 128, 128, 8
        $region32: #{resnet1d_forward.6} parent=11 // pred_fallthru
          _
        // Predicated region
        $region33: #{resnet1d_forward.6} parent=11 // pred_check
          %p326 = pneg %p200
        $region34: #{resnet1d_forward.6} parent=11 // pred_check_branch
          %328 = sbr.rel (%p326) target = $region36
        $region35: #{resnet1d_forward.6} parent=11 // pred_region
          %330 = vsyncadd [#allocation9], 0
          %s331 = sshll.u32 %s7, 4
          %s332 = int_to_ptr.hbm [resolvable:$true] %s331
          %s333 = sshll.u32 [#allocation10], 4
          %s334 = int_to_ptr.vmem [resolvable:$true] %s333
          %339 = dma.hbm_to_vmem [thread:$0]  %s332, 256, %s334, [#allocation9], 128, 128, 8
        $region36: #{resnet1d_forward.6} parent=11 // pred_fallthru
          _
      $region12: #{resnet1d_forward.6} parent=5 // pred_fallthru
        _
      %p340 = scmp.lt.s32.totalorder %s22, 2
      // Predicated region
      $region37: #{resnet1d_forward.6} parent=5 // pred_check
        %p341 = pneg %p340
      $region38: #{resnet1d_forward.6} parent=5 // pred_check_branch
        %343 = sbr.rel (%p341) target = $region40
      $region39: #{resnet1d_forward.6} parent=5 // pred_region
        // Predicated region
        $region41: #{resnet1d_forward.6} parent=39 // pred_check
          %p344 = pneg %p42
        $region42: #{resnet1d_forward.6} parent=39 // pred_check_branch
          %346 = sbr.rel (%p344) target = $region44
        $region43: #{resnet1d_forward.6} parent=39 // pred_region
          %p347 = scmp.lt.s32.totalorder %s22, 1
          %s348 = scalar_select %p347, %s22, 1
          %s349 = smul.addr %s348, 2
          %s350 = smul.addr %s349, 4
          %s351 = scalar_lea.vmem %s0, %s350
        $region44: #{resnet1d_forward.6} parent=39 // pred_fallthru
          _
        // Predicated region
        $region45: #{resnet1d_forward.6} parent=39 // pred_check
          %p352 = pneg %p68
        $region46: #{resnet1d_forward.6} parent=39 // pred_check_branch
          %354 = sbr.rel (%p352) target = $region48
        $region47: #{resnet1d_forward.6} parent=39 // pred_region
          %p355 = scmp.lt.s32.totalorder %s22, 1
          %s356 = scalar_select %p355, %s22, 1
          %s357 = smul.addr %s356, 2
          %s358 = smul.addr %s357, 4
          %s359 = scalar_lea.vmem %s1, %s358
        $region48: #{resnet1d_forward.6} parent=39 // pred_fallthru
          _
      $region40: #{resnet1d_forward.6} parent=5 // pred_fallthru
        _
      %p360 = scmp.le.s32.totalorder 1, %s22
      %p361 = scmp.lt.s32.totalorder %s22, 3
      %p362 = pnand %p360, %p361
      %p363 = pneg %p362
      // Predicated region
      $region49: #{resnet1d_forward.6} parent=5 // pred_check
        _
      $region50: #{resnet1d_forward.6} parent=5 // pred_check_branch
        %365 = sbr.rel (%p362) target = $region52
      $region51: #{resnet1d_forward.6} parent=5 // pred_region
        %s366 = ssub.s32 %s22, 1
        // Predicated region
        $region53: #{resnet1d_forward.6} parent=51 // pred_check
          %p367 = pneg %p116
        $region54: #{resnet1d_forward.6} parent=51 // pred_check_branch
          %369 = sbr.rel (%p367) target = $region56
        $region55: #{resnet1d_forward.6} parent=51 // pred_region
          %371 = dma.done [#allocation3], 256
        $region56: #{resnet1d_forward.6} parent=51 // pred_fallthru
          _
        // Predicated region
        $region57: #{resnet1d_forward.6} parent=51 // pred_check
          %p372 = pneg %p137
        $region58: #{resnet1d_forward.6} parent=51 // pred_check_branch
          %374 = sbr.rel (%p372) target = $region60
        $region59: #{resnet1d_forward.6} parent=51 // pred_region
          %376 = dma.done [#allocation6], 128
        $region60: #{resnet1d_forward.6} parent=51 // pred_fallthru
          _
        // Predicated region
        $region61: #{resnet1d_forward.6} parent=51 // pred_check
          %p377 = pneg %p158
        $region62: #{resnet1d_forward.6} parent=51 // pred_check_branch
          %379 = sbr.rel (%p377) target = $region64
        $region63: #{resnet1d_forward.6} parent=51 // pred_region
          %381 = dma.done [#allocation6], 128
        $region64: #{resnet1d_forward.6} parent=51 // pred_fallthru
          _
        // Predicated region
        $region65: #{resnet1d_forward.6} parent=51 // pred_check
          %p382 = pneg %p179
        $region66: #{resnet1d_forward.6} parent=51 // pred_check_branch
          %384 = sbr.rel (%p382) target = $region68
        $region67: #{resnet1d_forward.6} parent=51 // pred_region
          %386 = dma.done [#allocation9], 256
        $region68: #{resnet1d_forward.6} parent=51 // pred_fallthru
          _
        // Predicated region
        $region69: #{resnet1d_forward.6} parent=51 // pred_check
          %p387 = pneg %p200
        $region70: #{resnet1d_forward.6} parent=51 // pred_check_branch
          %389 = sbr.rel (%p387) target = $region72
        $region71: #{resnet1d_forward.6} parent=51 // pred_region
          %391 = dma.done [#allocation9], 256
        $region72: #{resnet1d_forward.6} parent=51 // pred_fallthru
          _
        %p392 = scmp.lt.s32.totalorder %s27, 1
        %s393 = scalar_select %p392, %s27, 1
        %s394 = smul.addr %s393, 2
        %s395 = smul.addr %s394, 4
        %s396 = scalar_lea.vmem %s0, %s395
        %p397 = pneg %p48
        %p398 = pneg %p45
        %p399 = scmp.lt.s32.totalorder %s27, 1
        %s400 = scalar_select %p399, %s27, 1
        %s401 = smul.addr %s400, 2
        %s402 = smul.addr %s401, 4
        %s403 = scalar_lea.vmem %s1, %s402
        %p404 = pneg %p74
        %p405 = pneg %p71
        %p406 = pneg %p95
        %p407 = pneg %p92
        %p408 = pneg %p116
        %p409 = pneg %p113
        %p410 = pneg %p137
        %p411 = pneg %p134
        %p412 = pneg %p158
        %p413 = pneg %p155
        %p414 = pneg %p179
        %p415 = pneg %p176
        %p416 = pneg %p200
        %p417 = pneg %p197
        %p418 = pneg %p226
        %p419 = pneg %p223
        %s420 = sand.u32 %s213, 1
        %s421 = scalar_lea.sflag [#allocation4], %s420
        %s422 = sand.u32 %s213, 1
        %s423 = smul.addr %s422, 8
        %s424 = scalar_lea.vmem [#allocation11], %s423
        %p425 = pneg %p252
        %p426 = pneg %p249
        %p427 = scmp.lt.s32.totalorder %s27, 1
        %s428 = scalar_select %p427, %s27, 1
        %s429 = smul.addr %s428, 2
        %s430 = smul.addr %s429, 4
        %s431 = scalar_lea.vmem %s9, %s430
        %p432 = scmp.lt.s32.totalorder %s27, 1
        %s433 = scalar_select %p432, %s27, 1
        %s434 = smul.addr %s433, 2
        %s435 = smul.addr %s434, 4
        %s436 = scalar_lea.vmem %s0, %s435
        %p437 = scmp.lt.s32.totalorder %s27, 1
        %s438 = scalar_select %p437, %s27, 1
        %s439 = smul.addr %s438, 2
        %s440 = smul.addr %s439, 4
        %s441 = scalar_lea.vmem %s1, %s440
        %p442 = scmp.lt.s32.totalorder %s27, 1
        %s443 = scalar_select %p442, %s27, 1
        %s444 = smul.addr %s443, 2
        %s445 = smul.addr %s444, 4
        %s446 = scalar_lea.vmem %s9, %s445
        %v448 = vld [vmem:[%s436] sm:$0xf]
        %s449 = scalar_lea.vmem %s436, 4
        %v450 = vld [vmem:[%s449] sm:$0xf]
        %v451 = vld [vmem:[%s2] sm:$0xf]
        %v452 = vld [vmem:[%s2 + $0x4] sm:$0xf]
        %v454 = vunpack.c.l.b16 %v450
        %v455 = vpack.c.b16 %v454, %v454
        %v457 = vunpack.c.l.b16 %v448
        %v458 = vpack.c.b16 %v457, %v457
        %459 = vrot.lane.b32.xlu0 %v458, 127
        %v460 = vpop.permute.xlu0 %459
        %461 = vrot.lane.b32.xlu0 %v455, 127
        %v462 = vpop.permute.xlu0 %461
        %463 = vrot.lane.b32.xlu0 %v458, 126
        %v464 = vpop.permute.xlu0 %463
        %vm465 = vcmask 1043456
        %v468 = vsel %vm465, %v448, %v455
        %v472 = vsel %vm465, %v460, %v462
        %v474 = vld [vmem:[#allocation2] sm:$0xff]
        %v475 = vld [vmem:[#allocation2 + $0x8] sm:$0xff]
        %477 = vset.pattern.permute.xlu0 0
        %478 = vperm.xlu0 %477, %v474
        %v479 = vpop.permute.xlu0 %478
        %482 = vset.pattern.permute.xlu0 0
        %483 = vperm.xlu0 %482, %v475
        %v484 = vpop.permute.xlu0 %483
        %v488 = vunpack.c.l.b16 %v451
        %v489 = vunpack.c.l.b16 %v452
        %v490 = vpack.c.b16 %v489, %v488
        %vm491 = vcmask 326656
        %v493 = vsel %vm491, %v490, 0
        %v496 = vsel %vm465, %v464, 0
        %498 = vmatpush.bf16.msra.mxu0 0
        %499 = vmatpush.bf16.msra.mxu0 0
        %500 = vmatpush.bf16.msra.mxu0 0
        %501 = vmatpush.bf16.msra.mxu0 0
        %502 = vmatpush.bf16.msra.mxu0 0
        %503 = vmatpush.bf16.msra.mxu0 %v496
        %504 = vmatpush.bf16.msra.mxu0 %v472
        %505 = vmatpush.bf16.msra.mxu0 %v468
        %506 = vmatmul.bf16.gmra.mxu0 %v493
        %v507 = vpop.f32.mrf.mxu0
        %v508 = vadd.f32 %v479, %v507
        %v509 = vpop.f32.mrf.mxu0
        %v510 = vadd.f32 %v484, %v509
        %511 = vdwg.mxu0
        %v512 = vmax.f32 %v508, 0.0
        %v513 = vmax.f32 %v510, 0.0
        %v514 = vpack.c.bf16 %v512, %v512
        %v515 = vpack.c.bf16 %v513, %v513
        %v518 = vunpack.c.l.b16 %v514
        %v519 = vunpack.c.l.b16 %v515
        %v520 = vpack.c.b16 %v519, %v518
        %521 = vrot.lane.b32.xlu0 %v520, 1
        %v522 = vpop.permute.xlu0 %521
        %vm523 = vcmask 7168
        %v526 = vsel %vm523, 0, %v522
        %vm527 = vcmask 138240
        %v528 = vsel %vm527, %v526, 0
        %530 = vrot.lane.b32.xlu0 %v455, 126
        %v531 = vpop.permute.xlu0 %530
        %v533 = vsel %vm465, %v450, %v460
        %v535 = vsel %vm465, %v462, %v464
        %v538 = vsel %vm465, %v531, 0
        %540 = vmatpush.bf16.msra.mxu0 0
        %541 = vmatpush.bf16.msra.mxu0 0
        %542 = vmatpush.bf16.msra.mxu0 0
        %543 = vmatpush.bf16.msra.mxu0 0
        %544 = vmatpush.bf16.msra.mxu0 0
        %545 = vmatpush.bf16.msra.mxu0 %v538
        %546 = vmatpush.bf16.msra.mxu0 %v535
        %547 = vmatpush.bf16.msra.mxu0 %v533
        %548 = vmatmul.bf16.gmra.mxu0 %v493
        %v549 = vpop.f32.mrf.mxu0
        %v550 = vadd.f32 %v479, %v549
        %v551 = vpop.f32.mrf.mxu0
        %v552 = vadd.f32 %v484, %v551
        %553 = vdwg.mxu0
        %v554 = vmax.f32 %v550, 0.0
        %v555 = vmax.f32 %v552, 0.0
        %v556 = vpack.c.bf16 %v554, %v554
        %v557 = vpack.c.bf16 %v555, %v555
        %v560 = vunpack.c.l.b16 %v556
        %v561 = vunpack.c.l.b16 %v557
        %v562 = vpack.c.b16 %v561, %v560
        %563 = vrot.lane.b32.xlu0 %v562, 1
        %v564 = vpop.permute.xlu0 %563
        %v566 = vsel %vm523, 0, %v564
        %v567 = vsel %vm527, %v566, 0
        %v569 = vld [vmem:[#allocation5] sm:$0xf]
        %v570 = vld [vmem:[#allocation5 + $0x4] sm:$0xf]
        %572 = vrot.lane.b32.xlu0 %v528, 127
        %v573 = vpop.permute.xlu0 %572
        %576 = vrot.lane.b32.xlu0 %v567, 127
        %v577 = vpop.permute.xlu0 %576
        %579 = vrot.lane.b32.xlu0 %v528, 126
        %v580 = vpop.permute.xlu0 %579
        %v582 = vld [vmem:[%s441] sm:$0xf]
        %s583 = scalar_lea.vmem %s441, 4
        %v584 = vld [vmem:[%s583] sm:$0xf]
        %v585 = vunpack.c.l.bf16 %v582
        %v586 = vunpack.c.l.bf16 %v584
        %v587 = vmax.f32 %v585, %v586
        %v588 = vpack.c.bf16 %v587, %v587
        %v589 = vld [vmem:[#allocation7] sm:$0xf]
        %v590 = vld [vmem:[#allocation7 + $0x4] sm:$0xf]
        %v593 = vunpack.c.l.b16 %v589
        %v594 = vunpack.c.l.b16 %v590
        %v595 = vpack.c.b16 %v594, %v593
        %vm596 = vcmask 64512
        %v598 = vsel %vm596, %v595, 0
        %v601 = vsel %vm465, %v588, 0
        %603 = vmatpush.bf16.msra.mxu0 0
        %604 = vmatpush.bf16.msra.mxu0 0
        %605 = vmatpush.bf16.msra.mxu0 0
        %606 = vmatpush.bf16.msra.mxu0 0
        %607 = vmatpush.bf16.msra.mxu0 0
        %608 = vmatpush.bf16.msra.mxu0 0
        %609 = vmatpush.bf16.msra.mxu0 0
        %610 = vmatpush.bf16.msra.mxu0 %v601
        %611 = vmatmul.bf16.gmra.mxu0 %v598
        %v612 = vpop.f32.mrf.mxu0
        %v613 = vadd.f32 0.0, %v612
        %v614 = vpop.f32.mrf.mxu0
        %v615 = vadd.f32 0.0, %v614
        %616 = vdwg.mxu0
        %v619 = vunpack.c.l.b16 %v569
        %v620 = vunpack.c.l.b16 %v570
        %v621 = vpack.c.b16 %v620, %v619
        %vm622 = vcmask 654336
        %v624 = vsel %vm622, %v621, 0
        %626 = vmatpush.bf16.msra.mxu0 0
        %627 = vmatpush.bf16.msra.mxu0 0
        %628 = vmatpush.bf16.msra.mxu0 0
        %629 = vmatpush.bf16.msra.mxu0 %v580
        %630 = vmatpush.bf16.msra.mxu0 %v577
        %631 = vmatpush.bf16.msra.mxu0 %v573
        %632 = vmatpush.bf16.msra.mxu0 %v567
        %633 = vmatpush.bf16.msra.mxu0 %v528
        %634 = vmatmul.bf16.gmra.mxu0 %v624
        %v635 = vpop.f32.mrf.mxu0
        %v636 = vadd.f32 %v613, %v635
        %v637 = vpop.f32.mrf.mxu0
        %v638 = vadd.f32 %v615, %v637
        %639 = vdwg.mxu0
        %v640 = vpack.c.bf16 %v636, %v636
        %v641 = vpack.c.bf16 %v638, %v638
        %vm642 = vcmask 125952
        %643 = vst.msk [vmem:[%s424] sm:$0xf] %vm642, %v640
        %644 = vst.msk [vmem:[%s424 + $0x4] sm:$0xf] %vm642, %v641
        %v645 = vld [vmem:[#allocation8] sm:$0xff]
        %v646 = vld [vmem:[#allocation8 + $0x8] sm:$0xff]
        %648 = vset.pattern.permute.xlu0 0
        %649 = vperm.xlu0 %648, %v645
        %v650 = vpop.permute.xlu0 %649
        %653 = vset.pattern.permute.xlu0 0
        %654 = vperm.xlu0 %653, %v646
        %v655 = vpop.permute.xlu0 %654
        %v657 = vmul.f32 %v636, %v650
        %v658 = vmul.f32 %v638, %v655
        %v659 = vld [vmem:[#allocation10] sm:$0xff]
        %v660 = vld [vmem:[#allocation10 + $0x8] sm:$0xff]
        %662 = vset.pattern.permute.xlu0 0
        %663 = vperm.xlu0 %662, %v659
        %v664 = vpop.permute.xlu0 %663
        %667 = vset.pattern.permute.xlu0 0
        %668 = vperm.xlu0 %667, %v660
        %v669 = vpop.permute.xlu0 %668
        %v671 = vadd.f32 %v657, %v664
        %v672 = vadd.f32 %v658, %v669
        %v673 = vmax.f32 %v671, 0.0
        %v674 = vmax.f32 %v672, 0.0
        %v675 = vpack.c.bf16 %v673, %v673
        %v676 = vpack.c.bf16 %v674, %v674
        %677 = vst.msk [vmem:[%s446] sm:$0xf] %vm642, %v675
        %678 = vst.msk [vmem:[%s446 + $0x4] sm:$0xf] %vm642, %v676
        %s679 = sand.u32 %s213, 1
        %s680 = scalar_lea.sflag [#allocation4], %s679
        %s681 = sand.u32 %s213, 1
        %s682 = smul.addr %s681, 8
        %s683 = scalar_lea.vmem [#allocation11], %s682
        %p684 = scmp.lt.s32.totalorder %s27, 1
        %s685 = scalar_select %p684, %s27, 1
        %s686 = smul.addr %s685, 2
        %s687 = smul.addr %s686, 4
        %s688 = scalar_lea.vmem %s9, %s687
        // Predicated region
        $region73: #{resnet1d_forward.6} parent=51 // pred_check
          %p689 = pneg %p223
        $region74: #{resnet1d_forward.6} parent=51 // pred_check_branch
          %691 = sbr.rel (%p689) target = $region76
        $region75: #{resnet1d_forward.6} parent=51 // pred_region
          %693 = vsyncadd %s680, 0
          %s694 = smul.addr %s27, 2
          %s695 = smul.addr %s694, 4
          %s696 = scalar_lea.hbm %s8, %s695
          %s697 = sshll.u32 %s683, 4
          %s698 = int_to_ptr.vmem [resolvable:$true] %s697
          %s699 = sshll.u32 %s696, 4
          %s700 = int_to_ptr.hbm [resolvable:$true] %s699
          %705 = dma.vmem_to_hbm [thread:$0]  %s698, 128, %s700, %s680, 64, 64, 4
        $region76: #{resnet1d_forward.6} parent=51 // pred_fallthru
          _
        // Predicated region
        $region77: #{resnet1d_forward.6} parent=51 // pred_check
          %p706 = pneg %p249
        $region78: #{resnet1d_forward.6} parent=51 // pred_check_branch
          %708 = sbr.rel (%p706) target = $region80
        $region79: #{resnet1d_forward.6} parent=51 // pred_region
          _
        $region80: #{resnet1d_forward.6} parent=51 // pred_fallthru
          _
      $region52: #{resnet1d_forward.6} parent=5 // pred_fallthru
        _
      %p709 = scmp.le.s32.totalorder 2, %s22
      // Predicated region
      $region81: #{resnet1d_forward.6} parent=5 // pred_check
        %p710 = pneg %p709
      $region82: #{resnet1d_forward.6} parent=5 // pred_check_branch
        %712 = sbr.rel (%p710) target = $region84
      $region83: #{resnet1d_forward.6} parent=5 // pred_region
        %s713 = ssub.s32 %s22, 2
        // Predicated region
        $region85: #{resnet1d_forward.6} parent=83 // pred_check
          %p714 = pneg %p229
        $region86: #{resnet1d_forward.6} parent=83 // pred_check_branch
          %716 = sbr.rel (%p714) target = $region88
        $region87: #{resnet1d_forward.6} parent=83 // pred_region
          %s717 = sand.u32 %s214, 1
          %s718 = scalar_lea.sflag [#allocation4], %s717
          %s719 = sand.u32 %s214, 1
          %s720 = smul.addr %s719, 8
          %s721 = scalar_lea.vmem [#allocation11], %s720
          %723 = dma.done %s718, 128
        $region88: #{resnet1d_forward.6} parent=83 // pred_fallthru
          _
        // Predicated region
        $region89: #{resnet1d_forward.6} parent=83 // pred_check
          %p724 = pneg %p255
        $region90: #{resnet1d_forward.6} parent=83 // pred_check_branch
          %726 = sbr.rel (%p724) target = $region92
        $region91: #{resnet1d_forward.6} parent=83 // pred_region
          %p727 = scmp.lt.s32.totalorder %s28, 1
          %s728 = scalar_select %p727, %s28, 1
          %s729 = smul.addr %s728, 2
          %s730 = smul.addr %s729, 4
          %s731 = scalar_lea.vmem %s9, %s730
        $region92: #{resnet1d_forward.6} parent=83 // pred_fallthru
          _
      $region84: #{resnet1d_forward.6} parent=5 // pred_fallthru
        _
    $region6: #{resnet1d_forward.6} parent=1 // loop_footer
      %s26 = sadd.s32 1, %s22
    $region7: #{resnet1d_forward.6} parent=1 // loop_footer_branch
      %21 = sbr.rel target = $region3
    $region8: #{resnet1d_forward.6} parent=1 // loop_exit
      _
    %732 = vsyncpa [#allocation3], 1
    %s733 = scalar_lea.sflag [#allocation3], 1
    %734 = vsyncpa %s733, 1
    %735 = vsyncpa [#allocation6], 1
    %736 = vsyncpa [#allocation9], 1
    %737 = vsyncpa [#allocation4], 1
    %s738 = scalar_lea.sflag [#allocation4], 1
    %739 = vsyncpa %s738, 1

// kernel: resnet1d_forward.7
$region0: #{resnet1d_forward.7}
  #allocation0 [shape = 'u32[]', space=smem, size = 0x4, offset = 0x4, fixed_abs, tag = 'smem constant byte address 0x4 - core index']
  #allocation1 [shape = 'u32[72,128]{1,0:T(1,128)}', space=vmem, size = 0x9000, scoped, tag = 'internal scratch']
  %s0 = inlined_call_operand.vmem [shape: f32[8,256], index: 0, kind: input, shape index: {}]
  %s1 = inlined_call_operand.vmem [shape: f32[256,128], index: 1, kind: input, shape index: {}]
  %s2 = inlined_call_operand.hbm [shape: f32[1,128], index: 2, kind: input, shape index: {}]
  %s3 = inlined_call_operand.vmem [shape: f32[8,128], index: 3, kind: output, shape index: {}]
  %s4 = sld [smem:[#allocation0]]
  $region26: #{resnet1d_forward.7} parent=0
    _
  %s6 = ssub.s32 1, %s4
  %s7 = scalar_select 0, %s6, %s4
  $region1: #{resnet1d_forward.7} parent=0
    #allocation2 [shape = 'u8[512]{0}', space=vmem, size = 0x400, scoped, tag = 'input window, operand 2, single buffered']
    #allocation3 [shape = 's32[1]{0}', space=sflag, size = 0x4, scoped, tag = 'scoped memory for resnet1d_forward.7']
    %8 = vsyncpa [#allocation3], 0
    // Predicated region
    $region2: #{resnet1d_forward.7} parent=1 // pred_check
      _
    $region3: #{resnet1d_forward.7} parent=1 // pred_check_branch
      %10 = sbr.rel (0) target = $region5
    $region4: #{resnet1d_forward.7} parent=1 // pred_region
      _
    $region5: #{resnet1d_forward.7} parent=1 // pred_fallthru
      _
    // Predicated region
    $region6: #{resnet1d_forward.7} parent=1 // pred_check
      _
    $region7: #{resnet1d_forward.7} parent=1 // pred_check_branch
      %12 = sbr.rel (0) target = $region9
    $region8: #{resnet1d_forward.7} parent=1 // pred_region
      _
    $region9: #{resnet1d_forward.7} parent=1 // pred_fallthru
      _
    // Predicated region
    $region10: #{resnet1d_forward.7} parent=1 // pred_check
      _
    $region11: #{resnet1d_forward.7} parent=1 // pred_check_branch
      %14 = sbr.rel (0) target = $region13
    $region12: #{resnet1d_forward.7} parent=1 // pred_region
      %16 = vsyncadd [#allocation3], 0
      %s18 = sshll.u32 %s2, 4
      %s19 = int_to_ptr.hbm [resolvable:$true] %s18
      %s20 = sshll.u32 [#allocation2], 4
      %s21 = int_to_ptr.vmem [resolvable:$true] %s20
      %23 = dma.hbm_to_vmem [thread:$0]  %s19, 16, %s21, [#allocation3]
    $region13: #{resnet1d_forward.7} parent=1 // pred_fallthru
      _
    // Predicated region
    $region14: #{resnet1d_forward.7} parent=1 // pred_check
      _
    $region15: #{resnet1d_forward.7} parent=1 // pred_check_branch
      %25 = sbr.rel (0) target = $region17
    $region16: #{resnet1d_forward.7} parent=1 // pred_region
      %27 = dma.done [#allocation3], 16
    $region17: #{resnet1d_forward.7} parent=1 // pred_fallthru
      _
    %v28 = vld [vmem:[%s0] sm:$0xff]
    %v29 = vld [vmem:[%s0 + $0x8] sm:$0xff]
    %v30 = vld [vmem:[%s1] sm:$0xff]
    %v31 = vld [vmem:[%s1 + $0x8] sm:$0xff]
    %v32 = vld [vmem:[%s1 + $0x10] sm:$0xff]
    %v33 = vld [vmem:[%s1 + $0x18] sm:$0xff]
    %v34 = vld [vmem:[%s1 + $0x20] sm:$0xff]
    %v35 = vld [vmem:[%s1 + $0x28] sm:$0xff]
    %v36 = vld [vmem:[%s1 + $0x30] sm:$0xff]
    %v37 = vld [vmem:[%s1 + $0x38] sm:$0xff]
    %v38 = vld [vmem:[%s1 + $0x40] sm:$0xff]
    %v39 = vld [vmem:[%s1 + $0x48] sm:$0xff]
    %v40 = vld [vmem:[%s1 + $0x50] sm:$0xff]
    %v41 = vld [vmem:[%s1 + $0x58] sm:$0xff]
    %v42 = vld [vmem:[%s1 + $0x60] sm:$0xff]
    %v43 = vld [vmem:[%s1 + $0x68] sm:$0xff]
    %v44 = vld [vmem:[%s1 + $0x70] sm:$0xff]
    %v45 = vld [vmem:[%s1 + $0x78] sm:$0xff]
    %v46 = vld [vmem:[%s1 + $0x80] sm:$0xff]
    %v47 = vld [vmem:[%s1 + $0x88] sm:$0xff]
    %v48 = vld [vmem:[%s1 + $0x90] sm:$0xff]
    %v49 = vld [vmem:[%s1 + $0x98] sm:$0xff]
    %v50 = vld [vmem:[%s1 + $0xa0] sm:$0xff]
    %v51 = vld [vmem:[%s1 + $0xa8] sm:$0xff]
    %v52 = vld [vmem:[%s1 + $0xb0] sm:$0xff]
    %v53 = vld [vmem:[%s1 + $0xb8] sm:$0xff]
    %v54 = vld [vmem:[%s1 + $0xc0] sm:$0xff]
    %v55 = vld [vmem:[%s1 + $0xc8] sm:$0xff]
    %v56 = vld [vmem:[%s1 + $0xd0] sm:$0xff]
    %v57 = vld [vmem:[%s1 + $0xd8] sm:$0xff]
    %v58 = vld [vmem:[%s1 + $0xe0] sm:$0xff]
    %v59 = vld [vmem:[%s1 + $0xe8] sm:$0xff]
    %v60 = vld [vmem:[%s1 + $0xf0] sm:$0xff]
    %v61 = vld [vmem:[%s1 + $0xf8] sm:$0xff]
    %v62 = vld [vmem:[#allocation2] sm:$0x1]
    %v64 = vperm.slane %v62, 0
    %66 = vmatpush.msra.mxu0 %v45
    %67 = vmatpush.msra.mxu0 %v44
    %68 = vmatpush.msra.mxu0 %v43
    %69 = vmatpush.msra.mxu0 %v42
    %70 = vmatpush.msra.mxu0 %v41
    %71 = vmatpush.msra.mxu0 %v40
    %72 = vmatpush.msra.mxu0 %v39
    %73 = vmatpush.msra.mxu0 %v38
    %74 = vmatpush.msra.mxu0 %v37
    %75 = vmatpush.msra.mxu0 %v36
    %76 = vmatpush.msra.mxu0 %v35
    %77 = vmatpush.msra.mxu0 %v34
    %78 = vmatpush.msra.mxu0 %v33
    %79 = vmatpush.msra.mxu0 %v32
    %80 = vmatpush.msra.mxu0 %v31
    %81 = vmatpush.msra.mxu0 %v30
    %82 = vmatmul.f32.gmra.mxu0 %v28
    %v83 = vpop.f32.mrf.mxu0
    %v84 = vadd.f32 %v64, %v83
    %85 = vdwg.mxu0
    %86 = vmatpush.msra.mxu0 %v61
    %87 = vmatpush.msra.mxu0 %v60
    %88 = vmatpush.msra.mxu0 %v59
    %89 = vmatpush.msra.mxu0 %v58
    %90 = vmatpush.msra.mxu0 %v57
    %91 = vmatpush.msra.mxu0 %v56
    %92 = vmatpush.msra.mxu0 %v55
    %93 = vmatpush.msra.mxu0 %v54
    %94 = vmatpush.msra.mxu0 %v53
    %95 = vmatpush.msra.mxu0 %v52
    %96 = vmatpush.msra.mxu0 %v51
    %97 = vmatpush.msra.mxu0 %v50
    %98 = vmatpush.msra.mxu0 %v49
    %99 = vmatpush.msra.mxu0 %v48
    %100 = vmatpush.msra.mxu0 %v47
    %101 = vmatpush.msra.mxu0 %v46
    %102 = vmatmul.f32.gmra.mxu0 %v29
    %v103 = vpop.f32.mrf.mxu0
    %v104 = vadd.f32 %v84, %v103
    %105 = vdwg.mxu0
    %106 = vst [vmem:[%s3] sm:$0xff] %v104
    // Predicated region
    $region18: #{resnet1d_forward.7} parent=1 // pred_check
      _
    $region19: #{resnet1d_forward.7} parent=1 // pred_check_branch
      %108 = sbr.rel (0) target = $region21
    $region20: #{resnet1d_forward.7} parent=1 // pred_region
      _
    $region21: #{resnet1d_forward.7} parent=1 // pred_fallthru
      _
    // Predicated region
    $region22: #{resnet1d_forward.7} parent=1 // pred_check
      _
    $region23: #{resnet1d_forward.7} parent=1 // pred_check_branch
      %110 = sbr.rel (0) target = $region25
    $region24: #{resnet1d_forward.7} parent=1 // pred_region
      _
    $region25: #{resnet1d_forward.7} parent=1 // pred_fallthru
      _
    %111 = vsyncpa [#allocation3], 1

</llo_original>
